<compile_context>
chip_gen: v6e
topology: v6e:2x2x1
jax: 0.10.0
libtpu: 0.0.40
codegen_flags: <defaults>
</compile_context>

<pallas_src>
import jax
import jax.numpy as jnp
from jax.experimental import pallas as pl
from jax.experimental.pallas import tpu as pltpu

K = 3            # Tnet k
N_POINTS = 64    # number of points (L dimension of Conv1d)
BATCH = 2
EPS = 1e-5       # nn.BatchNorm1d default eps

KPAD = 8         # conv1 contraction dim padded 3 -> 8 (sublane aligned)
C3_CHUNK = 256   # conv3 output-channel tile streamed through the grid
OUT_PAD = 128    # lane-dense fc3 output width (first K*K columns are real)
WEIGHT_BF16 = True   # weight-only bf16 (activations / biases / acc stay f32)


def make_tnet_kernel(batch, n_points):
    """Build the Tnet kernel closed over static (batch, n_points) sizes."""

    def f32(w):
        # Weights may arrive in bf16 (HBM-traffic halved); upcast is a cheap
        # VPU op relative to the DMA it saves. f32 everywhere else.
        return w.astype(jnp.float32)

    def kernel(x_ref,
               w1, b1, w2, b2,      # conv1/conv2 (BN folded), resident
               w3, b3,              # conv3: streamed (128, C3_CHUNK) chunks
               w4, b4,              # fc1:   streamed (C3_CHUNK, 512) chunks
               w5, b5, w6, b6,      # fc2 / fc3 (padded), resident
               o_ref,
               h_scratch, acc_scratch):
        i = pl.program_id(0)

        # Step 0 only: conv1+bn1+relu and conv2+bn2+relu over all B*N points,
        # stashed in VMEM; zero the fc1 accumulator.
        @pl.when(i == 0)
        def _():
            h1 = jnp.maximum(
                jnp.dot(x_ref[...], f32(w1[...]),
                        preferred_element_type=jnp.float32) + b1[...], 0.0)
            h_scratch[...] = jnp.maximum(
                jnp.dot(h1, f32(w2[...]),
                        preferred_element_type=jnp.float32) + b2[...], 0.0)
            acc_scratch[...] = jnp.zeros_like(acc_scratch)

        # conv3 chunk + bn3 + relu, fused with the max-pool over the points.
        hc = jnp.maximum(
            jnp.dot(h_scratch[...], f32(w3[...]),
                    preferred_element_type=jnp.float32) + b3[...], 0.0)
        pooled = jnp.max(hc.reshape(batch, n_points, hc.shape[-1]), axis=1)
        # The pooled chunk is exactly the fc1 contraction slice for step i:
        # accumulate the fc1 partial product immediately.
        acc_scratch[...] += jnp.dot(pooled, f32(w4[...]),
                                    preferred_element_type=jnp.float32)

        # Last step: finish fc1 (bias + relu), then fc2 + fc3, lane-dense store.
        @pl.when(i == pl.num_programs(0) - 1)
        def _():
            f1 = jnp.maximum(acc_scratch[...] + b4[...], 0.0)
            f2 = jnp.maximum(
                jnp.dot(f1, f32(w5[...]),
                        preferred_element_type=jnp.float32) + b5[...], 0.0)
            o_ref[...] = (jnp.dot(f2, f32(w6[...]),
                                  preferred_element_type=jnp.float32)
                          + b6[...])

    return kernel


def fold_bn(w, b, gamma, beta, rm, rv):
    """Fold eval-mode BatchNorm into a (Cout, Cin) weight / (Cout,) bias.

    Returns weight transposed to (Cin, Cout) and bias as (1, Cout) for the
    channels-last matmuls inside the kernel.
    """
    scale = gamma / jnp.sqrt(rv + EPS)
    w_f = (w * scale[:, None]).T                 # (Cin, Cout)
    b_f = (b - rm) * scale + beta                # (Cout,)
    return w_f.astype(jnp.float32), b_f[None, :].astype(jnp.float32)


def init_params(key):
    """Deterministic synthetic parameters matching Tnet(k=3) shapes (BN folded)."""
    layer_dims = [(K, 64), (64, 128), (128, 1024),        # conv1/2/3 (Cin, Cout)
                  (1024, 512), (512, 256), (256, K * K)]  # fc1/2/3
    has_bn = [True, True, True, True, True, False]

    folded = []
    for i, ((cin, cout), bn) in enumerate(zip(layer_dims, has_bn)):
        kw, kb, kg, kbeta, krm, krv = jax.random.split(jax.random.fold_in(key, i), 6)
        w = jax.random.normal(kw, (cout, cin), jnp.float32) * (1.0 / jnp.sqrt(cin))
        b = jax.random.normal(kb, (cout,), jnp.float32) * 0.1
        if bn:
            gamma = 1.0 + 0.1 * jax.random.normal(kg, (cout,), jnp.float32)
            beta = 0.1 * jax.random.normal(kbeta, (cout,), jnp.float32)
            rm = 0.1 * jax.random.normal(krm, (cout,), jnp.float32)
            rv = jax.random.uniform(krv, (cout,), jnp.float32, 0.5, 1.5)
            folded.append(fold_bn(w, b, gamma, beta, rm, rv))
        else:
            folded.append((w.T.astype(jnp.float32), b[None, :].astype(jnp.float32)))
    return folded


def pack_params(folded, weight_bf16=WEIGHT_BF16):
    """Pad / quantize the folded params into the layout the kernel expects.

    * w1 contraction dim padded 3 -> KPAD with zeros (exact).
    * fc3 (w6, b6) zero-padded to OUT_PAD output columns (lane-dense store).
    * Large weights optionally stored bf16 (weight-only quantization); the
      reference uses the same arrays, so the comparison stays tight.
    """
    (w1, b1), (w2, b2), (w3, b3), (w4, b4), (w5, b5), (w6, b6) = folded

    w1p = jnp.zeros((KPAD, w1.shape[1]), jnp.float32).at[:w1.shape[0], :].set(w1)
    kk = w6.shape[1]
    w6p = jnp.zeros((w6.shape[0], OUT_PAD), jnp.float32).at[:, :kk].set(w6)
    b6p = jnp.zeros((1, OUT_PAD), jnp.float32).at[:, :kk].set(b6)

    wd = jnp.bfloat16 if weight_bf16 else jnp.float32
    return [(w1p, b1),
            (w2.astype(wd), b2),
            (w3.astype(wd), b3),
            (w4.astype(wd), b4),
            (w5.astype(wd), b5),
            (w6p, b6p)]


def tnet_forward(x_ncl, packed):
    """x_ncl: (B, k, N) float32 (PyTorch Conv1d layout). Returns (B, k, k)."""
    B, k, N = x_ncl.shape
    kk = k * k
    bn = B * N

    (w1, b1), (w2, b2), (w3, b3), (w4, b4), (w5, b5), (w6, b6) = packed

    # Channels-last, batch flattened into the sublane dimension; pad the k=3
    # contraction to KPAD with zeros (exact, avoids a sub-tile operand).
    x = jnp.transpose(x_ncl, (0, 2, 1)).reshape(bn, k)
    x = jnp.pad(x, ((0, 0), (0, KPAD - k)))                        # (B*N, 8)

    cout3 = w3.shape[1]
    nchunk = cout3 // C3_CHUNK

    in_specs = [
        pl.BlockSpec((bn, KPAD), lambda i: (0, 0)),                   # x
        pl.BlockSpec(tuple(w1.shape), lambda i: (0, 0)),              # w1
        pl.BlockSpec(tuple(b1.shape), lambda i: (0, 0)),              # b1
        pl.BlockSpec(tuple(w2.shape), lambda i: (0, 0)),              # w2
        pl.BlockSpec(tuple(b2.shape), lambda i: (0, 0)),              # b2
        pl.BlockSpec((w3.shape[0], C3_CHUNK), lambda i: (0, i)),      # w3 stream
        pl.BlockSpec((1, C3_CHUNK), lambda i: (0, i)),                # b3 stream
        pl.BlockSpec((C3_CHUNK, w4.shape[1]), lambda i: (i, 0)),      # w4 stream
        pl.BlockSpec(tuple(b4.shape), lambda i: (0, 0)),              # b4
        pl.BlockSpec(tuple(w5.shape), lambda i: (0, 0)),              # w5
        pl.BlockSpec(tuple(b5.shape), lambda i: (0, 0)),              # b5
        pl.BlockSpec(tuple(w6.shape), lambda i: (0, 0)),              # w6 (padded)
        pl.BlockSpec(tuple(b6.shape), lambda i: (0, 0)),              # b6 (padded)
    ]

    out = pl.pallas_call(
        make_tnet_kernel(B, N),
        out_shape=jax.ShapeDtypeStruct((B, OUT_PAD), jnp.float32),
        grid_spec=pltpu.PrefetchScalarGridSpec(
            num_scalar_prefetch=0,
            grid=(nchunk,),
            in_specs=in_specs,
            out_specs=pl.BlockSpec((B, OUT_PAD), lambda i: (0, 0)),
            scratch_shapes=[
                pltpu.VMEM((bn, w2.shape[1]), jnp.float32),   # conv2 activation
                pltpu.VMEM((B, w4.shape[1]), jnp.float32),    # fc1 accumulator
            ]),
        compiler_params=pltpu.CompilerParams(
            dimension_semantics=("arbitrary",),               # serial accumulation
            vmem_limit_bytes=32 * 1024 * 1024),
    )(x, w1, b1, w2, b2, w3, b3, w4, b4, w5, b5, w6, b6)

    # init = eye(k).repeat(bs,1,1); matrix = fc3(xb).view(-1,k,k) + init
    return out[:, :kk].reshape(B, k, k) + jnp.eye(k, dtype=jnp.float32)[None]


def tnet_reference(x_ncl, packed):
    """Pure-JAX reference using the identical (padded / quantized) parameters."""
    B, k, N = x_ncl.shape
    (w1, b1), (w2, b2), (w3, b3), (w4, b4), (w5, b5), (w6, b6) = packed

    def mm(a, w):
        return jnp.dot(a, w.astype(jnp.float32),
                       preferred_element_type=jnp.float32)

    h = jnp.transpose(x_ncl, (0, 2, 1))                       # (B, N, k)
    h = jnp.pad(h, ((0, 0), (0, 0), (0, KPAD - k)))           # (B, N, 8)
    h = jnp.maximum(mm(h, w1) + b1, 0.0)
    h = jnp.maximum(mm(h, w2) + b2, 0.0)
    h = jnp.maximum(mm(h, w3) + b3, 0.0)
    pooled = jnp.max(h, axis=1)                               # (B, 1024)
    f = jnp.maximum(mm(pooled, w4) + b4, 0.0)
    f = jnp.maximum(mm(f, w5) + b5, 0.0)
    out = mm(f, w6) + b6
    return out[:, :k * k].reshape(B, k, k) + jnp.eye(k, dtype=jnp.float32)[None]


if __name__ == "__main__":
    key = jax.random.PRNGKey(0)
    kx, kp = jax.random.split(key)

    # PyTorch-style Conv1d input: (batch, channels=k, length=N)
    x = jax.random.normal(kx, (BATCH, K, N_POINTS), jnp.float32)
    packed = pack_params(init_params(kp))

    result = jax.block_until_ready(tnet_forward(x, packed))
    ref = tnet_reference(x, packed)

    assert result.shape == (BATCH, K, K)
    assert jnp.allclose(result, ref, atol=1e-4, rtol=1e-4), "mismatch vs reference"

    print("KERNEL_OK")
</pallas_src>

<mosaic_0001>
module attributes {stable_mosaic.version = 11 : i64} {
  func.func @kernel(%arg0: i32, %arg1: memref<128x8xf32, #tpu.memory_space<vmem>>, %arg2: memref<8x64xf32, #tpu.memory_space<vmem>>, %arg3: memref<1x64xf32, #tpu.memory_space<vmem>>, %arg4: memref<64x128xbf16, #tpu.memory_space<vmem>>, %arg5: memref<1x128xf32, #tpu.memory_space<vmem>>, %arg6: memref<128x256xbf16, #tpu.memory_space<vmem>>, %arg7: memref<1x256xf32, #tpu.memory_space<vmem>>, %arg8: memref<256x512xbf16, #tpu.memory_space<vmem>>, %arg9: memref<1x512xf32, #tpu.memory_space<vmem>>, %arg10: memref<512x256xbf16, #tpu.memory_space<vmem>>, %arg11: memref<1x256xf32, #tpu.memory_space<vmem>>, %arg12: memref<256x128xf32, #tpu.memory_space<vmem>>, %arg13: memref<1x128xf32, #tpu.memory_space<vmem>>, %arg14: memref<2x128xf32, #tpu.memory_space<vmem>>, %arg15: memref<128x128xf32, #tpu.memory_space<vmem>>, %arg16: memref<2x512xf32, #tpu.memory_space<vmem>>) attributes {dimension_semantics = [#tpu.dimension_semantics<arbitrary>], iteration_bounds = array<i64: 4>, scalar_prefetch = 0 : i64, scratch_operands = 2 : i64, tpu.core_type = #tpu.core_type<tc>, window_params = [{pipeline_mode = #tpu.pipeline_mode<synchronous>, transform_indices = @transform_0, window_bounds = array<i64: 128, 8>}, {pipeline_mode = #tpu.pipeline_mode<synchronous>, transform_indices = @transform_1, window_bounds = array<i64: 8, 64>}, {pipeline_mode = #tpu.pipeline_mode<synchronous>, transform_indices = @transform_2, window_bounds = array<i64: 1, 64>}, {pipeline_mode = #tpu.pipeline_mode<synchronous>, transform_indices = @transform_3, window_bounds = array<i64: 64, 128>}, {pipeline_mode = #tpu.pipeline_mode<synchronous>, transform_indices = @transform_4, window_bounds = array<i64: 1, 128>}, {transform_indices = @transform_5, window_bounds = array<i64: 128, 256>}, {transform_indices = @transform_6, window_bounds = array<i64: 1, 256>}, {transform_indices = @transform_7, window_bounds = array<i64: 256, 512>}, {pipeline_mode = #tpu.pipeline_mode<synchronous>, transform_indices = @transform_8, window_bounds = array<i64: 1, 512>}, {pipeline_mode = #tpu.pipeline_mode<synchronous>, transform_indices = @transform_9, window_bounds = array<i64: 512, 256>}, {pipeline_mode = #tpu.pipeline_mode<synchronous>, transform_indices = @transform_10, window_bounds = array<i64: 1, 256>}, {pipeline_mode = #tpu.pipeline_mode<synchronous>, transform_indices = @transform_11, window_bounds = array<i64: 256, 128>}, {pipeline_mode = #tpu.pipeline_mode<synchronous>, transform_indices = @transform_12, window_bounds = array<i64: 1, 128>}, {pipeline_mode = #tpu.pipeline_mode<synchronous>, transform_indices = @transform_13, window_bounds = array<i64: 2, 128>}]} {
    %c0_i32 = arith.constant 0 : i32
    %0 = arith.cmpi eq, %arg0, %c0_i32 : i32
    %1 = arith.extui %0 : i1 to i32
    %c0_i32_0 = arith.constant 0 : i32
    %2 = arith.cmpi ne, %1, %c0_i32_0 : i32
    scf.if %2 {
      %c0_16 = arith.constant 0 : index
      %c0_17 = arith.constant 0 : index
      %23 = vector.load %arg1[%c0_16, %c0_17] : memref<128x8xf32, #tpu.memory_space<vmem>>, vector<128x8xf32>
      %c0_18 = arith.constant 0 : index
      %c0_19 = arith.constant 0 : index
      %24 = vector.load %arg2[%c0_18, %c0_19] : memref<8x64xf32, #tpu.memory_space<vmem>>, vector<8x64xf32>
      %cst_20 = arith.constant dense<0.000000e+00> : vector<128x64xf32>
      %25 = tpu.matmul %23, %24, %cst_20 {dimension_numbers = #tpu.dot_dimension_numbers<[1], [0], [0], [1], [0, 0, 1, 1], [], []>} : vector<128x8xf32>, vector<8x64xf32>, vector<128x64xf32> -> vector<128x64xf32>
      %c0_21 = arith.constant 0 : index
      %c0_22 = arith.constant 0 : index
      %26 = vector.load %arg3[%c0_21, %c0_22] : memref<1x64xf32, #tpu.memory_space<vmem>>, vector<1x64xf32>
      %27 = vector.broadcast %26 : vector<1x64xf32> to vector<128x64xf32>
      %28 = arith.addf %25, %27 : vector<128x64xf32>
      %cst_23 = arith.constant 0.000000e+00 : f32
      %29 = vector.broadcast %cst_23 : f32 to vector<128x64xf32>
      %30 = arith.maximumf %28, %29 : vector<128x64xf32>
      %c0_24 = arith.constant 0 : index
      %c0_25 = arith.constant 0 : index
      %31 = vector.load %arg4[%c0_24, %c0_25] : memref<64x128xbf16, #tpu.memory_space<vmem>>, vector<64x128xbf16>
      %32 = arith.extf %31 : vector<64x128xbf16> to vector<64x128xf32>
      %cst_26 = arith.constant dense<0.000000e+00> : vector<128x128xf32>
      %33 = tpu.matmul %30, %32, %cst_26 {dimension_numbers = #tpu.dot_dimension_numbers<[1], [0], [0], [1], [0, 0, 1, 1], [], []>} : vector<128x64xf32>, vector<64x128xf32>, vector<128x128xf32> -> vector<128x128xf32>
      %c0_27 = arith.constant 0 : index
      %c0_28 = arith.constant 0 : index
      %34 = vector.load %arg5[%c0_27, %c0_28] : memref<1x128xf32, #tpu.memory_space<vmem>>, vector<1x128xf32>
      %35 = vector.broadcast %34 : vector<1x128xf32> to vector<128x128xf32>
      %36 = arith.addf %33, %35 : vector<128x128xf32>
      %cst_29 = arith.constant 0.000000e+00 : f32
      %37 = vector.broadcast %cst_29 : f32 to vector<128x128xf32>
      %38 = arith.maximumf %36, %37 : vector<128x128xf32>
      %c0_30 = arith.constant 0 : index
      %c0_31 = arith.constant 0 : index
      %39 = vector.load %arg15[%c0_30, %c0_31] : memref<128x128xf32, #tpu.memory_space<vmem>>, vector<128x128xf32>
      tpu.vector_store %arg15[%c0_30, %c0_31], %38 {strides = array<i32>} : memref<128x128xf32, #tpu.memory_space<vmem>>, vector<128x128xf32>,
      %cst_32 = arith.constant 0.000000e+00 : f32
      %40 = vector.broadcast %cst_32 : f32 to vector<2x512xf32>
      %c0_33 = arith.constant 0 : index
      %c0_34 = arith.constant 0 : index
      %41 = vector.load %arg16[%c0_33, %c0_34] : memref<2x512xf32, #tpu.memory_space<vmem>>, vector<2x512xf32>
      tpu.vector_store %arg16[%c0_33, %c0_34], %40 {strides = array<i32>} : memref<2x512xf32, #tpu.memory_space<vmem>>, vector<2x512xf32>,
    } else {
    }
    %c0 = arith.constant 0 : index
    %c0_1 = arith.constant 0 : index
    %3 = vector.load %arg15[%c0, %c0_1] : memref<128x128xf32, #tpu.memory_space<vmem>>, vector<128x128xf32>
    %c0_2 = arith.constant 0 : index
    %c0_3 = arith.constant 0 : index
    %4 = vector.load %arg6[%c0_2, %c0_3] : memref<128x256xbf16, #tpu.memory_space<vmem>>, vector<128x256xbf16>
    %5 = arith.extf %4 : vector<128x256xbf16> to vector<128x256xf32>
    %cst = arith.constant dense<0.000000e+00> : vector<128x256xf32>
    %6 = tpu.matmul %3, %5, %cst {dimension_numbers = #tpu.dot_dimension_numbers<[1], [0], [0], [1], [0, 0, 1, 1], [], []>} : vector<128x128xf32>, vector<128x256xf32>, vector<128x256xf32> -> vector<128x256xf32>
    %c0_4 = arith.constant 0 : index
    %c0_5 = arith.constant 0 : index
    %7 = vector.load %arg7[%c0_4, %c0_5] : memref<1x256xf32, #tpu.memory_space<vmem>>, vector<1x256xf32>
    %8 = vector.broadcast %7 : vector<1x256xf32> to vector<128x256xf32>
    %9 = arith.addf %6, %8 : vector<128x256xf32>
    %cst_6 = arith.constant 0.000000e+00 : f32
    %10 = vector.broadcast %cst_6 : f32 to vector<128x256xf32>
    %11 = arith.maximumf %9, %10 : vector<128x256xf32>
    %12 = vector.shape_cast %11 : vector<128x256xf32> to vector<2x64x256xf32>
    %cst_7 = arith.constant dense<0xFF800000> : vector<2x256xf32>
    %13 = vector.multi_reduction <maximumf>, %12, %cst_7 [1] : vector<2x64x256xf32> to vector<2x256xf32>
    %c0_8 = arith.constant 0 : index
    %c0_9 = arith.constant 0 : index
    %14 = vector.load %arg16[%c0_8, %c0_9] : memref<2x512xf32, #tpu.memory_space<vmem>>, vector<2x512xf32>
    %c0_10 = arith.constant 0 : index
    %c0_11 = arith.constant 0 : index
    %15 = vector.load %arg8[%c0_10, %c0_11] : memref<256x512xbf16, #tpu.memory_space<vmem>>, vector<256x512xbf16>
    %16 = arith.extf %15 : vector<256x512xbf16> to vector<256x512xf32>
    %cst_12 = arith.constant dense<0.000000e+00> : vector<2x512xf32>
    %17 = tpu.matmul %13, %16, %cst_12 {dimension_numbers = #tpu.dot_dimension_numbers<[1], [0], [0], [1], [0, 0, 1, 1], [], []>} : vector<2x256xf32>, vector<256x512xf32>, vector<2x512xf32> -> vector<2x512xf32>
    %18 = arith.addf %14, %17 : vector<2x512xf32>
    %c0_13 = arith.constant 0 : index
    %c0_14 = arith.constant 0 : index
    %19 = vector.load %arg16[%c0_13, %c0_14] : memref<2x512xf32, #tpu.memory_space<vmem>>, vector<2x512xf32>
    tpu.vector_store %arg16[%c0_13, %c0_14], %18 {strides = array<i32>} : memref<2x512xf32, #tpu.memory_space<vmem>>, vector<2x512xf32>,
    %c3_i32 = arith.constant 3 : i32
    %20 = arith.cmpi eq, %arg0, %c3_i32 : i32
    %21 = arith.extui %20 : i1 to i32
    %c0_i32_15 = arith.constant 0 : i32
    %22 = arith.cmpi ne, %21, %c0_i32_15 : i32
    scf.if %22 {
      %c0_16 = arith.constant 0 : index
      %c0_17 = arith.constant 0 : index
      %23 = vector.load %arg16[%c0_16, %c0_17] : memref<2x512xf32, #tpu.memory_space<vmem>>, vector<2x512xf32>
      %c0_18 = arith.constant 0 : index
      %c0_19 = arith.constant 0 : index
      %24 = vector.load %arg9[%c0_18, %c0_19] : memref<1x512xf32, #tpu.memory_space<vmem>>, vector<1x512xf32>
      %25 = vector.broadcast %24 : vector<1x512xf32> to vector<2x512xf32>
      %26 = arith.addf %23, %25 : vector<2x512xf32>
      %cst_20 = arith.constant 0.000000e+00 : f32
      %27 = vector.broadcast %cst_20 : f32 to vector<2x512xf32>
      %28 = arith.maximumf %26, %27 : vector<2x512xf32>
      %c0_21 = arith.constant 0 : index
      %c0_22 = arith.constant 0 : index
      %29 = vector.load %arg10[%c0_21, %c0_22] : memref<512x256xbf16, #tpu.memory_space<vmem>>, vector<512x256xbf16>
      %30 = arith.extf %29 : vector<512x256xbf16> to vector<512x256xf32>
      %cst_23 = arith.constant dense<0.000000e+00> : vector<2x256xf32>
      %31 = tpu.matmul %28, %30, %cst_23 {dimension_numbers = #tpu.dot_dimension_numbers<[1], [0], [0], [1], [0, 0, 1, 1], [], []>} : vector<2x512xf32>, vector<512x256xf32>, vector<2x256xf32> -> vector<2x256xf32>
      %c0_24 = arith.constant 0 : index
      %c0_25 = arith.constant 0 : index
      %32 = vector.load %arg11[%c0_24, %c0_25] : memref<1x256xf32, #tpu.memory_space<vmem>>, vector<1x256xf32>
      %33 = vector.broadcast %32 : vector<1x256xf32> to vector<2x256xf32>
      %34 = arith.addf %31, %33 : vector<2x256xf32>
      %cst_26 = arith.constant 0.000000e+00 : f32
      %35 = vector.broadcast %cst_26 : f32 to vector<2x256xf32>
      %36 = arith.maximumf %34, %35 : vector<2x256xf32>
      %c0_27 = arith.constant 0 : index
      %c0_28 = arith.constant 0 : index
      %37 = vector.load %arg12[%c0_27, %c0_28] : memref<256x128xf32, #tpu.memory_space<vmem>>, vector<256x128xf32>
      %cst_29 = arith.constant dense<0.000000e+00> : vector<2x128xf32>
      %38 = tpu.matmul %36, %37, %cst_29 {dimension_numbers = #tpu.dot_dimension_numbers<[1], [0], [0], [1], [0, 0, 1, 1], [], []>} : vector<2x256xf32>, vector<256x128xf32>, vector<2x128xf32> -> vector<2x128xf32>
      %c0_30 = arith.constant 0 : index
      %c0_31 = arith.constant 0 : index
      %39 = vector.load %arg13[%c0_30, %c0_31] : memref<1x128xf32, #tpu.memory_space<vmem>>, vector<1x128xf32>
      %40 = vector.broadcast %39 : vector<1x128xf32> to vector<2x128xf32>
      %41 = arith.addf %38, %40 : vector<2x128xf32>
      %c0_32 = arith.constant 0 : index
      %c0_33 = arith.constant 0 : index
      %42 = vector.load %arg14[%c0_32, %c0_33] : memref<2x128xf32, #tpu.memory_space<vmem>>, vector<2x128xf32>
      tpu.vector_store %arg14[%c0_32, %c0_33], %41 {strides = array<i32>} : memref<2x128xf32, #tpu.memory_space<vmem>>, vector<2x128xf32>,
    } else {
    }
    return
  }
  func.func @transform_0(%arg0: i32) -> (i32, i32) {
    %c0_i32 = arith.constant 0 : i32
    %c0_i32_0 = arith.constant 0 : i32
    %c0_i32_1 = arith.constant 0 : i32
    return %c0_i32, %c0_i32_0 : i32, i32
  }
  func.func @transform_1(%arg0: i32) -> (i32, i32) {
    %c0_i32 = arith.constant 0 : i32
    %c0_i32_0 = arith.constant 0 : i32
    %c0_i32_1 = arith.constant 0 : i32
    return %c0_i32, %c0_i32_0 : i32, i32
  }
  func.func @transform_2(%arg0: i32) -> (i32, i32) {
    %c0_i32 = arith.constant 0 : i32
    %c0_i32_0 = arith.constant 0 : i32
    %c0_i32_1 = arith.constant 0 : i32
    return %c0_i32, %c0_i32_0 : i32, i32
  }
  func.func @transform_3(%arg0: i32) -> (i32, i32) {
    %c0_i32 = arith.constant 0 : i32
    %c0_i32_0 = arith.constant 0 : i32
    %c0_i32_1 = arith.constant 0 : i32
    return %c0_i32, %c0_i32_0 : i32, i32
  }
  func.func @transform_4(%arg0: i32) -> (i32, i32) {
    %c0_i32 = arith.constant 0 : i32
    %c0_i32_0 = arith.constant 0 : i32
    %c0_i32_1 = arith.constant 0 : i32
    return %c0_i32, %c0_i32_0 : i32, i32
  }
  func.func @transform_5(%arg0: i32) -> (i32, i32) {
    %c0_i32 = arith.constant 0 : i32
    %c0_i32_0 = arith.constant 0 : i32
    return %c0_i32, %arg0 : i32, i32
  }
  func.func @transform_6(%arg0: i32) -> (i32, i32) {
    %c0_i32 = arith.constant 0 : i32
    %c0_i32_0 = arith.constant 0 : i32
    return %c0_i32, %arg0 : i32, i32
  }
  func.func @transform_7(%arg0: i32) -> (i32, i32) {
    %c0_i32 = arith.constant 0 : i32
    %c0_i32_0 = arith.constant 0 : i32
    return %arg0, %c0_i32 : i32, i32
  }
  func.func @transform_8(%arg0: i32) -> (i32, i32) {
    %c0_i32 = arith.constant 0 : i32
    %c0_i32_0 = arith.constant 0 : i32
    %c0_i32_1 = arith.constant 0 : i32
    return %c0_i32, %c0_i32_0 : i32, i32
  }
  func.func @transform_9(%arg0: i32) -> (i32, i32) {
    %c0_i32 = arith.constant 0 : i32
    %c0_i32_0 = arith.constant 0 : i32
    %c0_i32_1 = arith.constant 0 : i32
    return %c0_i32, %c0_i32_0 : i32, i32
  }
  func.func @transform_10(%arg0: i32) -> (i32, i32) {
    %c0_i32 = arith.constant 0 : i32
    %c0_i32_0 = arith.constant 0 : i32
    %c0_i32_1 = arith.constant 0 : i32
    return %c0_i32, %c0_i32_0 : i32, i32
  }
  func.func @transform_11(%arg0: i32) -> (i32, i32) {
    %c0_i32 = arith.constant 0 : i32
    %c0_i32_0 = arith.constant 0 : i32
    %c0_i32_1 = arith.constant 0 : i32
    return %c0_i32, %c0_i32_0 : i32, i32
  }
  func.func @transform_12(%arg0: i32) -> (i32, i32) {
    %c0_i32 = arith.constant 0 : i32
    %c0_i32_0 = arith.constant 0 : i32
    %c0_i32_1 = arith.constant 0 : i32
    return %c0_i32, %c0_i32_0 : i32, i32
  }
  func.func @transform_13(%arg0: i32) -> (i32, i32) {
    %c0_i32 = arith.constant 0 : i32
    %c0_i32_0 = arith.constant 0 : i32
    %c0_i32_1 = arith.constant 0 : i32
    return %c0_i32, %c0_i32_0 : i32, i32
  }
}

</mosaic_0001>

<llo_original>
// kernel: tpu_custom_call.1
$region0: #{tpu_custom_call.1}
  #allocation0 [shape = 'u32[]', space=smem, size = 0x4, offset = 0x4, fixed_abs, tag = 'smem constant byte address 0x4 - core index']
  #allocation1 [shape = 'u32[144,128]{1,0:T(1,128)}', space=vmem, size = 0x12000, scoped, tag = 'internal scratch']
  #allocation2 [shape = 'f32[128,128]{1,0:T(8,128)}', space=vmem, size = 0x10000, scoped, tag = 'scratch operand']
  #allocation3 [shape = 'f32[2,512]{1,0:T(2,128)}', space=vmem, size = 0x1000, scoped, tag = 'scratch operand']
  %s0 = inlined_call_operand.vmem [shape: f32[128,8], index: 0, kind: input, shape index: {}]
  %s1 = inlined_call_operand.vmem [shape: f32[8,64], index: 1, kind: input, shape index: {}]
  %s2 = inlined_call_operand.vmem [shape: f32[1,64], index: 2, kind: input, shape index: {}]
  %s3 = inlined_call_operand.vmem [shape: bf16[64,128], index: 3, kind: input, shape index: {}]
  %s4 = inlined_call_operand.vmem [shape: f32[1,128], index: 4, kind: input, shape index: {}]
  %s5 = inlined_call_operand.hbm [shape: bf16[128,1024], index: 5, kind: input, shape index: {}]
  %s6 = inlined_call_operand.vmem [shape: f32[1,1024], index: 6, kind: input, shape index: {}]
  %s7 = inlined_call_operand.hbm [shape: bf16[1024,512], index: 7, kind: input, shape index: {}]
  %s8 = inlined_call_operand.vmem [shape: f32[1,512], index: 8, kind: input, shape index: {}]
  %s9 = inlined_call_operand.hbm [shape: bf16[512,256], index: 9, kind: input, shape index: {}]
  %s10 = inlined_call_operand.vmem [shape: f32[1,256], index: 10, kind: input, shape index: {}]
  %s11 = inlined_call_operand.hbm [shape: f32[256,128], index: 11, kind: input, shape index: {}]
  %s12 = inlined_call_operand.vmem [shape: f32[1,128], index: 12, kind: input, shape index: {}]
  %s13 = inlined_call_operand.hbm [shape: f32[2,128], index: 13, kind: output, shape index: {}]
  %s14 = sld [smem:[#allocation0]]
  $region109: #{tpu_custom_call.1} parent=0
    _
  %s16 = ssub.s32 1, %s14
  %s17 = scalar_select 0, %s16, %s14
  $region1: #{tpu_custom_call.1} parent=0
    #allocation4 [shape = 'u8[131072]{0}', space=vmem, size = 0x20000, scoped, tag = 'input window, operand 5']
    #allocation5 [shape = 's32[2]{0}', space=sflag, size = 0x8, scoped, tag = 'scoped memory for tpu_custom_call.1']
    #allocation6 [shape = 's32[2]{0}', space=sflag, size = 0x8, scoped, tag = 'scoped memory for tpu_custom_call.1']
    #allocation7 [shape = 'u8[524288]{0}', space=vmem, size = 0x80000, scoped, tag = 'input window, operand 7']
    #allocation8 [shape = 's32[2]{0}', space=sflag, size = 0x8, scoped, tag = 'scoped memory for tpu_custom_call.1']
    #allocation9 [shape = 'u8[262144]{0}', space=vmem, size = 0x40000, scoped, tag = 'input window, operand 9, single buffered']
    #allocation10 [shape = 'u8[131072]{0}', space=vmem, size = 0x20000, scoped, tag = 'input window, operand 11, single buffered']
    #allocation11 [shape = 's32[1]{0}', space=sflag, size = 0x4, scoped, tag = 'scoped memory for tpu_custom_call.1']
    #allocation12 [shape = 'u8[1024]{0}', space=vmem, size = 0x400, scoped, tag = 'output window, operand 0, single buffered']
    %18 = vsyncpa [#allocation5], 0
    %s19 = scalar_lea.sflag [#allocation5], 1
    %20 = vsyncpa %s19, 0
    %21 = vsyncpa [#allocation8], 0
    %s22 = scalar_lea.sflag [#allocation8], 1
    %23 = vsyncpa %s22, 0
    %24 = vsyncpa [#allocation11], 0
    %25 = vsyncpa [#allocation6], 0
    loop: start=0, step=1, limit=6
    $region2: #{tpu_custom_call.1} parent=1 // loop_pre_header
      _
    $region3: #{tpu_custom_call.1} parent=1 // loop_header
      %s27 = sphi 0, %s31
      %p28 = scmp.ge.s32.totalorder %s27, 6
      %s35 = sphi 0, %s35
      %s37 = sphi 0, %s35
      %s38 = sphi 0, %s37
      %s52 = sphi 0, %s38
      %s56 = sphi 0, %s56
      %s58 = sphi 0, %s56
      %s59 = sphi 0, %s58
      %s73 = sphi 0, %s59
      %s77 = sphi 0, %s77
      %s79 = sphi 0, %s77
      %s80 = sphi 0, %s79
      %s94 = sphi 0, %s80
      %s98 = sphi 0, %s98
      %s100 = sphi 0, %s98
      %s101 = sphi 0, %s100
      %s115 = sphi 0, %s101
      %s119 = sphi 0, %s119
      %s121 = sphi 0, %s119
      %s122 = sphi 0, %s121
      %s136 = sphi 0, %s122
      %s142 = sphi 0, %s144
      %s145 = sphi 0, %s142
      %s146 = sphi 0, %s145
      %s162 = sphi 0, %s146
      %s168 = sphi 0, %s170
      %s171 = sphi 0, %s168
      %s172 = sphi 0, %s171
      %s188 = sphi 0, %s172
      %s194 = sphi 0, %s196
      %s197 = sphi 0, %s194
      %s198 = sphi 0, %s197
      %s214 = sphi 0, %s198
      %s218 = sphi 0, %s218
      %s220 = sphi 0, %s218
      %s221 = sphi 0, %s220
      %s235 = sphi 0, %s221
      %s239 = sphi 0, %s239
      %s241 = sphi 0, %s239
      %s242 = sphi 0, %s241
      %s256 = sphi 0, %s242
      %s260 = sphi 0, %s260
      %s262 = sphi 0, %s260
      %s263 = sphi 0, %s262
      %s277 = sphi 0, %s263
      %s281 = sphi 0, %s281
      %s283 = sphi 0, %s281
      %s284 = sphi 0, %s283
      %s298 = sphi 0, %s284
      %s302 = sphi 0, %s302
      %s304 = sphi 0, %s302
      %s305 = sphi 0, %s304
      %s319 = sphi 0, %s305
      %s323 = sphi 0, %s323
      %s325 = sphi 0, %s323
      %s326 = sphi 0, %s325
      %s340 = sphi 0, %s326
    $region4: #{tpu_custom_call.1} parent=1 // loop_header_branch
      %30 = sbr.rel (%p28) target = $region8
    $region5: #{tpu_custom_call.1} parent=1 // loop_body
      %s32 = ssub.s32 %s27, 1
      %s33 = ssub.s32 %s27, 2
      %s34 = sadd.s32 %s27, 1
      %s36 = sadd.s32 %s35, 1
      %p39 = scmp.eq.s32.totalorder %s27, 3
      %p40 = scmp.ne.s32.totalorder %s35, %s37
      %p41 = scmp.eq.s32.totalorder %s27, 0
      %p42 = por %p40, %p41
      %p43 = scmp.ne.s32.totalorder %s35, %s37
      %p44 = scmp.eq.s32.totalorder %s32, 3
      %p45 = por %p43, %p44
      %p46 = scmp.ne.s32.totalorder %s37, %s38
      %p47 = scmp.eq.s32.totalorder %s32, 0
      %p48 = por %p46, %p47
      %p49 = scmp.ne.s32.totalorder %s37, %s38
      %p50 = scmp.eq.s32.totalorder %s33, 3
      %p51 = por %p49, %p50
      %p53 = scmp.ne.s32.totalorder %s38, %s52
      %p54 = scmp.eq.s32.totalorder %s33, 0
      %p55 = por %p53, %p54
      %s57 = sadd.s32 %s56, 1
      %p60 = scmp.eq.s32.totalorder %s27, 3
      %p61 = scmp.ne.s32.totalorder %s56, %s58
      %p62 = scmp.eq.s32.totalorder %s27, 0
      %p63 = por %p61, %p62
      %p64 = scmp.ne.s32.totalorder %s56, %s58
      %p65 = scmp.eq.s32.totalorder %s32, 3
      %p66 = por %p64, %p65
      %p67 = scmp.ne.s32.totalorder %s58, %s59
      %p68 = scmp.eq.s32.totalorder %s32, 0
      %p69 = por %p67, %p68
      %p70 = scmp.ne.s32.totalorder %s58, %s59
      %p71 = scmp.eq.s32.totalorder %s33, 3
      %p72 = por %p70, %p71
      %p74 = scmp.ne.s32.totalorder %s59, %s73
      %p75 = scmp.eq.s32.totalorder %s33, 0
      %p76 = por %p74, %p75
      %s78 = sadd.s32 %s77, 1
      %p81 = scmp.eq.s32.totalorder %s27, 3
      %p82 = scmp.ne.s32.totalorder %s77, %s79
      %p83 = scmp.eq.s32.totalorder %s27, 0
      %p84 = por %p82, %p83
      %p85 = scmp.ne.s32.totalorder %s77, %s79
      %p86 = scmp.eq.s32.totalorder %s32, 3
      %p87 = por %p85, %p86
      %p88 = scmp.ne.s32.totalorder %s79, %s80
      %p89 = scmp.eq.s32.totalorder %s32, 0
      %p90 = por %p88, %p89
      %p91 = scmp.ne.s32.totalorder %s79, %s80
      %p92 = scmp.eq.s32.totalorder %s33, 3
      %p93 = por %p91, %p92
      %p95 = scmp.ne.s32.totalorder %s80, %s94
      %p96 = scmp.eq.s32.totalorder %s33, 0
      %p97 = por %p95, %p96
      %s99 = sadd.s32 %s98, 1
      %p102 = scmp.eq.s32.totalorder %s27, 3
      %p103 = scmp.ne.s32.totalorder %s98, %s100
      %p104 = scmp.eq.s32.totalorder %s27, 0
      %p105 = por %p103, %p104
      %p106 = scmp.ne.s32.totalorder %s98, %s100
      %p107 = scmp.eq.s32.totalorder %s32, 3
      %p108 = por %p106, %p107
      %p109 = scmp.ne.s32.totalorder %s100, %s101
      %p110 = scmp.eq.s32.totalorder %s32, 0
      %p111 = por %p109, %p110
      %p112 = scmp.ne.s32.totalorder %s100, %s101
      %p113 = scmp.eq.s32.totalorder %s33, 3
      %p114 = por %p112, %p113
      %p116 = scmp.ne.s32.totalorder %s101, %s115
      %p117 = scmp.eq.s32.totalorder %s33, 0
      %p118 = por %p116, %p117
      %s120 = sadd.s32 %s119, 1
      %p123 = scmp.eq.s32.totalorder %s27, 3
      %p124 = scmp.ne.s32.totalorder %s119, %s121
      %p125 = scmp.eq.s32.totalorder %s27, 0
      %p126 = por %p124, %p125
      %p127 = scmp.ne.s32.totalorder %s119, %s121
      %p128 = scmp.eq.s32.totalorder %s32, 3
      %p129 = por %p127, %p128
      %p130 = scmp.ne.s32.totalorder %s121, %s122
      %p131 = scmp.eq.s32.totalorder %s32, 0
      %p132 = por %p130, %p131
      %p133 = scmp.ne.s32.totalorder %s121, %s122
      %p134 = scmp.eq.s32.totalorder %s33, 3
      %p135 = por %p133, %p134
      %p137 = scmp.ne.s32.totalorder %s122, %s136
      %p138 = scmp.eq.s32.totalorder %s33, 0
      %p139 = por %p137, %p138
      %s140 = ssub.s32 %s27, %s34
      %p141 = scmp.eq.s32.totalorder %s140, 0
      %s143 = sadd.s32 %s142, 1
      %s144 = scalar_select %p141, %s142, %s143
      %p147 = pneg %p141
      %p148 = scmp.eq.s32.totalorder %s27, 3
      %p149 = por %p147, %p148
      %p150 = scmp.ne.s32.totalorder %s142, %s145
      %p151 = scmp.eq.s32.totalorder %s27, 0
      %p152 = por %p150, %p151
      %p153 = scmp.ne.s32.totalorder %s142, %s145
      %p154 = scmp.eq.s32.totalorder %s32, 3
      %p155 = por %p153, %p154
      %p156 = scmp.ne.s32.totalorder %s145, %s146
      %p157 = scmp.eq.s32.totalorder %s32, 0
      %p158 = por %p156, %p157
      %p159 = scmp.ne.s32.totalorder %s145, %s146
      %p160 = scmp.eq.s32.totalorder %s33, 3
      %p161 = por %p159, %p160
      %p163 = scmp.ne.s32.totalorder %s146, %s162
      %p164 = scmp.eq.s32.totalorder %s33, 0
      %p165 = por %p163, %p164
      %s166 = ssub.s32 %s27, %s34
      %p167 = scmp.eq.s32.totalorder %s166, 0
      %s169 = sadd.s32 %s168, 1
      %s170 = scalar_select %p167, %s168, %s169
      %p173 = pneg %p167
      %p174 = scmp.eq.s32.totalorder %s27, 3
      %p175 = por %p173, %p174
      %p176 = scmp.ne.s32.totalorder %s168, %s171
      %p177 = scmp.eq.s32.totalorder %s27, 0
      %p178 = por %p176, %p177
      %p179 = scmp.ne.s32.totalorder %s168, %s171
      %p180 = scmp.eq.s32.totalorder %s32, 3
      %p181 = por %p179, %p180
      %p182 = scmp.ne.s32.totalorder %s171, %s172
      %p183 = scmp.eq.s32.totalorder %s32, 0
      %p184 = por %p182, %p183
      %p185 = scmp.ne.s32.totalorder %s171, %s172
      %p186 = scmp.eq.s32.totalorder %s33, 3
      %p187 = por %p185, %p186
      %p189 = scmp.ne.s32.totalorder %s172, %s188
      %p190 = scmp.eq.s32.totalorder %s33, 0
      %p191 = por %p189, %p190
      %s192 = ssub.s32 %s27, %s34
      %p193 = scmp.eq.s32.totalorder %s192, 0
      %s195 = sadd.s32 %s194, 1
      %s196 = scalar_select %p193, %s194, %s195
      %p199 = pneg %p193
      %p200 = scmp.eq.s32.totalorder %s27, 3
      %p201 = por %p199, %p200
      %p202 = scmp.ne.s32.totalorder %s194, %s197
      %p203 = scmp.eq.s32.totalorder %s27, 0
      %p204 = por %p202, %p203
      %p205 = scmp.ne.s32.totalorder %s194, %s197
      %p206 = scmp.eq.s32.totalorder %s32, 3
      %p207 = por %p205, %p206
      %p208 = scmp.ne.s32.totalorder %s197, %s198
      %p209 = scmp.eq.s32.totalorder %s32, 0
      %p210 = por %p208, %p209
      %p211 = scmp.ne.s32.totalorder %s197, %s198
      %p212 = scmp.eq.s32.totalorder %s33, 3
      %p213 = por %p211, %p212
      %p215 = scmp.ne.s32.totalorder %s198, %s214
      %p216 = scmp.eq.s32.totalorder %s33, 0
      %p217 = por %p215, %p216
      %s219 = sadd.s32 %s218, 1
      %p222 = scmp.eq.s32.totalorder %s27, 3
      %p223 = scmp.ne.s32.totalorder %s218, %s220
      %p224 = scmp.eq.s32.totalorder %s27, 0
      %p225 = por %p223, %p224
      %p226 = scmp.ne.s32.totalorder %s218, %s220
      %p227 = scmp.eq.s32.totalorder %s32, 3
      %p228 = por %p226, %p227
      %p229 = scmp.ne.s32.totalorder %s220, %s221
      %p230 = scmp.eq.s32.totalorder %s32, 0
      %p231 = por %p229, %p230
      %p232 = scmp.ne.s32.totalorder %s220, %s221
      %p233 = scmp.eq.s32.totalorder %s33, 3
      %p234 = por %p232, %p233
      %p236 = scmp.ne.s32.totalorder %s221, %s235
      %p237 = scmp.eq.s32.totalorder %s33, 0
      %p238 = por %p236, %p237
      %s240 = sadd.s32 %s239, 1
      %p243 = scmp.eq.s32.totalorder %s27, 3
      %p244 = scmp.ne.s32.totalorder %s239, %s241
      %p245 = scmp.eq.s32.totalorder %s27, 0
      %p246 = por %p244, %p245
      %p247 = scmp.ne.s32.totalorder %s239, %s241
      %p248 = scmp.eq.s32.totalorder %s32, 3
      %p249 = por %p247, %p248
      %p250 = scmp.ne.s32.totalorder %s241, %s242
      %p251 = scmp.eq.s32.totalorder %s32, 0
      %p252 = por %p250, %p251
      %p253 = scmp.ne.s32.totalorder %s241, %s242
      %p254 = scmp.eq.s32.totalorder %s33, 3
      %p255 = por %p253, %p254
      %p257 = scmp.ne.s32.totalorder %s242, %s256
      %p258 = scmp.eq.s32.totalorder %s33, 0
      %p259 = por %p257, %p258
      %s261 = sadd.s32 %s260, 1
      %p264 = scmp.eq.s32.totalorder %s27, 3
      %p265 = scmp.ne.s32.totalorder %s260, %s262
      %p266 = scmp.eq.s32.totalorder %s27, 0
      %p267 = por %p265, %p266
      %p268 = scmp.ne.s32.totalorder %s260, %s262
      %p269 = scmp.eq.s32.totalorder %s32, 3
      %p270 = por %p268, %p269
      %p271 = scmp.ne.s32.totalorder %s262, %s263
      %p272 = scmp.eq.s32.totalorder %s32, 0
      %p273 = por %p271, %p272
      %p274 = scmp.ne.s32.totalorder %s262, %s263
      %p275 = scmp.eq.s32.totalorder %s33, 3
      %p276 = por %p274, %p275
      %p278 = scmp.ne.s32.totalorder %s263, %s277
      %p279 = scmp.eq.s32.totalorder %s33, 0
      %p280 = por %p278, %p279
      %s282 = sadd.s32 %s281, 1
      %p285 = scmp.eq.s32.totalorder %s27, 3
      %p286 = scmp.ne.s32.totalorder %s281, %s283
      %p287 = scmp.eq.s32.totalorder %s27, 0
      %p288 = por %p286, %p287
      %p289 = scmp.ne.s32.totalorder %s281, %s283
      %p290 = scmp.eq.s32.totalorder %s32, 3
      %p291 = por %p289, %p290
      %p292 = scmp.ne.s32.totalorder %s283, %s284
      %p293 = scmp.eq.s32.totalorder %s32, 0
      %p294 = por %p292, %p293
      %p295 = scmp.ne.s32.totalorder %s283, %s284
      %p296 = scmp.eq.s32.totalorder %s33, 3
      %p297 = por %p295, %p296
      %p299 = scmp.ne.s32.totalorder %s284, %s298
      %p300 = scmp.eq.s32.totalorder %s33, 0
      %p301 = por %p299, %p300
      %s303 = sadd.s32 %s302, 1
      %p306 = scmp.eq.s32.totalorder %s27, 3
      %p307 = scmp.ne.s32.totalorder %s302, %s304
      %p308 = scmp.eq.s32.totalorder %s27, 0
      %p309 = por %p307, %p308
      %p310 = scmp.ne.s32.totalorder %s302, %s304
      %p311 = scmp.eq.s32.totalorder %s32, 3
      %p312 = por %p310, %p311
      %p313 = scmp.ne.s32.totalorder %s304, %s305
      %p314 = scmp.eq.s32.totalorder %s32, 0
      %p315 = por %p313, %p314
      %p316 = scmp.ne.s32.totalorder %s304, %s305
      %p317 = scmp.eq.s32.totalorder %s33, 3
      %p318 = por %p316, %p317
      %p320 = scmp.ne.s32.totalorder %s305, %s319
      %p321 = scmp.eq.s32.totalorder %s33, 0
      %p322 = por %p320, %p321
      %s324 = sadd.s32 %s323, 1
      %p327 = scmp.eq.s32.totalorder %s27, 3
      %p328 = scmp.ne.s32.totalorder %s323, %s325
      %p329 = scmp.eq.s32.totalorder %s27, 0
      %p330 = por %p328, %p329
      %p331 = scmp.ne.s32.totalorder %s323, %s325
      %p332 = scmp.eq.s32.totalorder %s32, 3
      %p333 = por %p331, %p332
      %p334 = scmp.ne.s32.totalorder %s325, %s326
      %p335 = scmp.eq.s32.totalorder %s32, 0
      %p336 = por %p334, %p335
      %p337 = scmp.ne.s32.totalorder %s325, %s326
      %p338 = scmp.eq.s32.totalorder %s33, 3
      %p339 = por %p337, %p338
      %p341 = scmp.ne.s32.totalorder %s326, %s340
      %p342 = scmp.eq.s32.totalorder %s33, 0
      %p343 = por %p341, %p342
      %p344 = scmp.le.s32.totalorder 1, %s27
      %p345 = scmp.lt.s32.totalorder %s27, 5
      %p346 = pnand %p344, %p345
      %p347 = pneg %p346
      // Predicated region
      $region9: #{tpu_custom_call.1} parent=5 // pred_check
        _
      $region10: #{tpu_custom_call.1} parent=5 // pred_check_branch
        %349 = sbr.rel (%p346) target = $region12
      $region11: #{tpu_custom_call.1} parent=5 // pred_region
        %s350 = ssub.s32 %s27, 1
        // Predicated region
        $region13: #{tpu_custom_call.1} parent=11 // pred_check
          %p351 = pneg %p48
        $region14: #{tpu_custom_call.1} parent=11 // pred_check_branch
          %353 = sbr.rel (%p351) target = $region16
        $region15: #{tpu_custom_call.1} parent=11 // pred_region
          _
        $region16: #{tpu_custom_call.1} parent=11 // pred_fallthru
          _
        // Predicated region
        $region17: #{tpu_custom_call.1} parent=11 // pred_check
          %p354 = pneg %p69
        $region18: #{tpu_custom_call.1} parent=11 // pred_check_branch
          %356 = sbr.rel (%p354) target = $region20
        $region19: #{tpu_custom_call.1} parent=11 // pred_region
          _
        $region20: #{tpu_custom_call.1} parent=11 // pred_fallthru
          _
        // Predicated region
        $region21: #{tpu_custom_call.1} parent=11 // pred_check
          %p357 = pneg %p90
        $region22: #{tpu_custom_call.1} parent=11 // pred_check_branch
          %359 = sbr.rel (%p357) target = $region24
        $region23: #{tpu_custom_call.1} parent=11 // pred_region
          _
        $region24: #{tpu_custom_call.1} parent=11 // pred_fallthru
          _
        // Predicated region
        $region25: #{tpu_custom_call.1} parent=11 // pred_check
          %p360 = pneg %p111
        $region26: #{tpu_custom_call.1} parent=11 // pred_check_branch
          %362 = sbr.rel (%p360) target = $region28
        $region27: #{tpu_custom_call.1} parent=11 // pred_region
          _
        $region28: #{tpu_custom_call.1} parent=11 // pred_fallthru
          _
        // Predicated region
        $region29: #{tpu_custom_call.1} parent=11 // pred_check
          %p363 = pneg %p132
        $region30: #{tpu_custom_call.1} parent=11 // pred_check_branch
          %365 = sbr.rel (%p363) target = $region32
        $region31: #{tpu_custom_call.1} parent=11 // pred_region
          _
        $region32: #{tpu_custom_call.1} parent=11 // pred_fallthru
          _
        // Predicated region
        $region33: #{tpu_custom_call.1} parent=11 // pred_check
          %p366 = pneg %p231
        $region34: #{tpu_custom_call.1} parent=11 // pred_check_branch
          %368 = sbr.rel (%p366) target = $region36
        $region35: #{tpu_custom_call.1} parent=11 // pred_region
          _
        $region36: #{tpu_custom_call.1} parent=11 // pred_fallthru
          _
        // Predicated region
        $region37: #{tpu_custom_call.1} parent=11 // pred_check
          %p369 = pneg %p252
        $region38: #{tpu_custom_call.1} parent=11 // pred_check_branch
          %371 = sbr.rel (%p369) target = $region40
        $region39: #{tpu_custom_call.1} parent=11 // pred_region
          %s373 = ssub.s32 8192, 8192
          %374 = vsyncadd [#allocation8], %s373
          %s375 = sshll.u32 [#allocation9], 4
          %s376 = int_to_ptr.vmem [resolvable:$true] %s375
          %381 = dma.hbm_to_vmem [thread:$0]  %s9, 8192, %s376, [#allocation8], 128, 128, 8
        $region40: #{tpu_custom_call.1} parent=11 // pred_fallthru
          _
        // Predicated region
        $region41: #{tpu_custom_call.1} parent=11 // pred_check
          %p382 = pneg %p273
        $region42: #{tpu_custom_call.1} parent=11 // pred_check_branch
          %384 = sbr.rel (%p382) target = $region44
        $region43: #{tpu_custom_call.1} parent=11 // pred_region
          _
        $region44: #{tpu_custom_call.1} parent=11 // pred_fallthru
          _
        // Predicated region
        $region45: #{tpu_custom_call.1} parent=11 // pred_check
          %p385 = pneg %p294
        $region46: #{tpu_custom_call.1} parent=11 // pred_check_branch
          %387 = sbr.rel (%p385) target = $region48
        $region47: #{tpu_custom_call.1} parent=11 // pred_region
          %s389 = ssub.s32 4096, 4096
          %390 = vsyncadd [#allocation11], %s389
          %s391 = sshll.u32 [#allocation10], 4
          %s392 = int_to_ptr.vmem [resolvable:$true] %s391
          %397 = dma.hbm_to_vmem [thread:$0]  %s11, 4096, %s392, [#allocation11], 128, 128, 8
        $region48: #{tpu_custom_call.1} parent=11 // pred_fallthru
          _
        // Predicated region
        $region49: #{tpu_custom_call.1} parent=11 // pred_check
          %p398 = pneg %p315
        $region50: #{tpu_custom_call.1} parent=11 // pred_check_branch
          %400 = sbr.rel (%p398) target = $region52
        $region51: #{tpu_custom_call.1} parent=11 // pred_region
          _
        $region52: #{tpu_custom_call.1} parent=11 // pred_fallthru
          _
      $region12: #{tpu_custom_call.1} parent=5 // pred_fallthru
        _
      %p401 = scmp.lt.s32.totalorder %s27, 4
      // Predicated region
      $region53: #{tpu_custom_call.1} parent=5 // pred_check
        %p402 = pneg %p401
      $region54: #{tpu_custom_call.1} parent=5 // pred_check_branch
        %404 = sbr.rel (%p402) target = $region56
      $region55: #{tpu_custom_call.1} parent=5 // pred_region
        // Predicated region
        $region57: #{tpu_custom_call.1} parent=55 // pred_check
          %p405 = pneg %p152
        $region58: #{tpu_custom_call.1} parent=55 // pred_check_branch
          %407 = sbr.rel (%p405) target = $region60
        $region59: #{tpu_custom_call.1} parent=55 // pred_region
          %s408 = sand.u32 %s142, 1
          %s409 = scalar_lea.sflag [#allocation5], %s408
          %s410 = sand.u32 %s142, 1
          %s411 = smul.addr %s410, 128
          %s412 = scalar_lea.vmem [#allocation4], %s411
          %s413 = smul.u32 2, %s27
          %s415 = ssub.s32 2048, 2048
          %416 = vsyncadd %s409, %s415
          %s417 = smul.addr %s413, 64
          %s418 = scalar_lea.hbm %s5, %s417
          %s419 = sshll.u32 %s412, 4
          %s420 = int_to_ptr.vmem [resolvable:$true] %s419
          %425 = dma.hbm_to_vmem [thread:$0]  %s418, 2048, %s420, %s409, 512, 128, 8
        $region60: #{tpu_custom_call.1} parent=55 // pred_fallthru
          _
        // Predicated region
        $region61: #{tpu_custom_call.1} parent=55 // pred_check
          %p426 = pneg %p178
        $region62: #{tpu_custom_call.1} parent=55 // pred_check_branch
          %428 = sbr.rel (%p426) target = $region64
        $region63: #{tpu_custom_call.1} parent=55 // pred_region
          %s429 = smul.u32 2, %s27
          %p430 = scmp.lt.s32.totalorder %s429, 7
          %s431 = scalar_select %p430, %s429, 7
          %s432 = scalar_lea.vmem %s6, %s431
          %s433 = smul.u32 2, %s27
        $region64: #{tpu_custom_call.1} parent=55 // pred_fallthru
          _
        // Predicated region
        $region65: #{tpu_custom_call.1} parent=55 // pred_check
          %p434 = pneg %p204
        $region66: #{tpu_custom_call.1} parent=55 // pred_check_branch
          %436 = sbr.rel (%p434) target = $region68
        $region67: #{tpu_custom_call.1} parent=55 // pred_region
          %s437 = sand.u32 %s27, 1
          %s438 = scalar_lea.sflag [#allocation8], %s437
          %s439 = sand.u32 %s194, 1
          %s440 = smul.addr %s439, 512
          %s441 = scalar_lea.vmem [#allocation7], %s440
          %s442 = smul.u32 32, %s27
          %s444 = ssub.s32 8192, 8192
          %445 = vsyncadd %s438, %s444
          %s446 = smul.addr %s442, 4
          %s447 = smul.addr %s446, 64
          %s448 = scalar_lea.hbm %s7, %s447
          %s449 = sshll.u32 %s441, 4
          %s450 = int_to_ptr.vmem [resolvable:$true] %s449
          %455 = dma.hbm_to_vmem [thread:$0]  %s448, 8192, %s450, %s438, 256, 256, 16
        $region68: #{tpu_custom_call.1} parent=55 // pred_fallthru
          _
      $region56: #{tpu_custom_call.1} parent=5 // pred_fallthru
        _
      %p456 = scmp.le.s32.totalorder 1, %s27
      %p457 = scmp.lt.s32.totalorder %s27, 5
      %p458 = pnand %p456, %p457
      %p459 = pneg %p458
      // Predicated region
      $region69: #{tpu_custom_call.1} parent=5 // pred_check
        _
      $region70: #{tpu_custom_call.1} parent=5 // pred_check_branch
        %461 = sbr.rel (%p458) target = $region72
      $region71: #{tpu_custom_call.1} parent=5 // pred_region
        %s462 = ssub.s32 %s27, 1
        %s463 = sand.u32 %s145, 1
        %s464 = scalar_lea.sflag [#allocation5], %s463
        %s465 = sand.u32 %s145, 1
        %s466 = smul.addr %s465, 128
        %s467 = scalar_lea.vmem [#allocation4], %s466
        // Predicated region
        $region73: #{tpu_custom_call.1} parent=71 // pred_check
          %p468 = pneg %p158
        $region74: #{tpu_custom_call.1} parent=71 // pred_check_branch
          %470 = sbr.rel (%p468) target = $region76
        $region75: #{tpu_custom_call.1} parent=71 // pred_region
          %471 = dma.done %s464, 2048
        $region76: #{tpu_custom_call.1} parent=71 // pred_fallthru
          _
        %s472 = sand.u32 %s32, 1
        %s473 = scalar_lea.sflag [#allocation8], %s472
        %s474 = sand.u32 %s197, 1
        %s475 = smul.addr %s474, 512
        %s476 = scalar_lea.vmem [#allocation7], %s475
        // Predicated region
        $region77: #{tpu_custom_call.1} parent=71 // pred_check
          %p477 = pneg %p210
        $region78: #{tpu_custom_call.1} parent=71 // pred_check_branch
          %479 = sbr.rel (%p477) target = $region80
        $region79: #{tpu_custom_call.1} parent=71 // pred_region
          %480 = dma.done %s473, 8192
        $region80: #{tpu_custom_call.1} parent=71 // pred_fallthru
          _
        // Predicated region
        $region81: #{tpu_custom_call.1} parent=71 // pred_check
          %p481 = pneg %p252
        $region82: #{tpu_custom_call.1} parent=71 // pred_check_branch
          %483 = sbr.rel (%p481) target = $region84
        $region83: #{tpu_custom_call.1} parent=71 // pred_region
          %484 = dma.done [#allocation8], 8192
        $region84: #{tpu_custom_call.1} parent=71 // pred_fallthru
          _
        // Predicated region
        $region85: #{tpu_custom_call.1} parent=71 // pred_check
          %p485 = pneg %p294
        $region86: #{tpu_custom_call.1} parent=71 // pred_check_branch
          %487 = sbr.rel (%p485) target = $region88
        $region87: #{tpu_custom_call.1} parent=71 // pred_region
          %488 = dma.done [#allocation11], 4096
        $region88: #{tpu_custom_call.1} parent=71 // pred_fallthru
          _
        %p489 = pneg %p48
        %p490 = pneg %p45
        %p491 = pneg %p69
        %p492 = pneg %p66
        %p493 = pneg %p90
        %p494 = pneg %p87
        %p495 = pneg %p111
        %p496 = pneg %p108
        %p497 = pneg %p132
        %p498 = pneg %p129
        %s499 = sand.u32 %s145, 1
        %s500 = scalar_lea.sflag [#allocation5], %s499
        %s501 = sand.u32 %s145, 1
        %s502 = smul.addr %s501, 128
        %s503 = scalar_lea.vmem [#allocation4], %s502
        %p504 = pneg %p158
        %p505 = pneg %p155
        %s506 = smul.u32 2, %s32
        %p507 = scmp.lt.s32.totalorder %s506, 7
        %s508 = scalar_select %p507, %s506, 7
        %s509 = scalar_lea.vmem %s6, %s508
        %p510 = pneg %p184
        %p511 = pneg %p181
        %s512 = sand.u32 %s32, 1
        %s513 = scalar_lea.sflag [#allocation8], %s512
        %s514 = sand.u32 %s197, 1
        %s515 = smul.addr %s514, 512
        %s516 = scalar_lea.vmem [#allocation7], %s515
        %p517 = pneg %p210
        %p518 = pneg %p207
        %p519 = pneg %p231
        %p520 = pneg %p228
        %p521 = pneg %p252
        %p522 = pneg %p249
        %p523 = pneg %p273
        %p524 = pneg %p270
        %p525 = pneg %p294
        %p526 = pneg %p291
        %p527 = pneg %p315
        %p528 = pneg %p312
        %p529 = pneg %p336
        %p530 = pneg %p333
        %s531 = smul.u32 2, %s32
        %s532 = smul.u32 2, %s32
        %p533 = scmp.lt.s32.totalorder %s532, 7
        %s534 = scalar_select %p533, %s532, 7
        %s535 = scalar_lea.vmem %s6, %s534
        %s536 = smul.u32 2, %s32
        %s537 = smul.u32 32, %s32
        %p538 = scmp.eq.s32.totalorder %s32, 0
        // Predicated region
        $region89: #{tpu_custom_call.1} parent=71 // pred_check
          %p539 = pneg %p538
        $region90: #{tpu_custom_call.1} parent=71 // pred_check_branch
          %541 = sbr.rel (%p539) target = $region92
        $region91: #{tpu_custom_call.1} parent=71 // pred_region
          %v542 = vld [vmem:[%s0] sm:$0xff]
          %v543 = vld [vmem:[%s0 + $0x8] sm:$0xff]
          %v544 = vld [vmem:[%s0 + $0x10] sm:$0xff]
          %v545 = vld [vmem:[%s0 + $0x18] sm:$0xff]
          %v546 = vld [vmem:[%s0 + $0x20] sm:$0xff]
          %v547 = vld [vmem:[%s0 + $0x28] sm:$0xff]
          %v548 = vld [vmem:[%s0 + $0x30] sm:$0xff]
          %v549 = vld [vmem:[%s0 + $0x38] sm:$0xff]
          %v550 = vld [vmem:[%s0 + $0x40] sm:$0xff]
          %v551 = vld [vmem:[%s0 + $0x48] sm:$0xff]
          %v552 = vld [vmem:[%s0 + $0x50] sm:$0xff]
          %v553 = vld [vmem:[%s0 + $0x58] sm:$0xff]
          %v554 = vld [vmem:[%s0 + $0x60] sm:$0xff]
          %v555 = vld [vmem:[%s0 + $0x68] sm:$0xff]
          %v556 = vld [vmem:[%s0 + $0x70] sm:$0xff]
          %v557 = vld [vmem:[%s0 + $0x78] sm:$0xff]
          %v558 = vld [vmem:[%s1] sm:$0xff]
          %v559 = vld [vmem:[%s2] sm:$0x1]
          %v561 = vlaneseq
          %v562 = vshrl.u32 %v561, 7
          %v563 = vsub.s32 0, %v562
          %v564 = vrot.slane %v559, %v563
          %vm566 = vcmask 64512
          %v568 = vsel %vm566, %v542, 0
          %v571 = vsel %vm566, %v543, 0
          %v574 = vsel %vm566, %v544, 0
          %v577 = vsel %vm566, %v545, 0
          %v580 = vsel %vm566, %v546, 0
          %v583 = vsel %vm566, %v547, 0
          %v586 = vsel %vm566, %v548, 0
          %v589 = vsel %vm566, %v549, 0
          %v592 = vsel %vm566, %v550, 0
          %v595 = vsel %vm566, %v551, 0
          %v598 = vsel %vm566, %v552, 0
          %v601 = vsel %vm566, %v553, 0
          %v604 = vsel %vm566, %v554, 0
          %v607 = vsel %vm566, %v555, 0
          %v610 = vsel %vm566, %v556, 0
          %v613 = vsel %vm566, %v557, 0
          %615 = vmatprep.subr.mxu0 0.0
          %616 = vmatpush1.msra.mxu0 0.0
          %617 = vmatprep.subr.mxu0 0.0
          %618 = vmatpush1.msra.mxu0 0.0
          %619 = vmatprep.subr.mxu0 0.0
          %620 = vmatpush1.msra.mxu0 0.0
          %621 = vmatprep.subr.mxu0 0.0
          %622 = vmatpush1.msra.mxu0 0.0
          %623 = vmatprep.subr.mxu0 0.0
          %624 = vmatpush1.msra.mxu0 0.0
          %625 = vmatprep.subr.mxu0 0.0
          %626 = vmatpush1.msra.mxu0 0.0
          %627 = vmatprep.subr.mxu0 0.0
          %628 = vmatpush1.msra.mxu0 0.0
          %629 = vmatprep.subr.mxu0 0.0
          %630 = vmatpush1.msra.mxu0 0.0
          %631 = vmatprep.subr.mxu0 0.0
          %632 = vmatpush1.msra.mxu0 0.0
          %633 = vmatprep.subr.mxu0 0.0
          %634 = vmatpush1.msra.mxu0 0.0
          %635 = vmatprep.subr.mxu0 0.0
          %636 = vmatpush1.msra.mxu0 0.0
          %637 = vmatprep.subr.mxu0 0.0
          %638 = vmatpush1.msra.mxu0 0.0
          %639 = vmatprep.subr.mxu0 0.0
          %640 = vmatpush1.msra.mxu0 0.0
          %641 = vmatprep.subr.mxu0 0.0
          %642 = vmatpush1.msra.mxu0 0.0
          %643 = vmatprep.subr.mxu0 0.0
          %644 = vmatpush1.msra.mxu0 0.0
          %645 = vmatprep.subr.mxu0 0.0
          %646 = vmatpush1.msra.mxu0 %v558
          %647 = vmatprep.subr.mxu0 0.0
          %648 = vmatpush2.msra.mxu0 0.0
          %649 = vmatprep.subr.mxu0 0.0
          %650 = vmatpush2.msra.mxu0 0.0
          %651 = vmatprep.subr.mxu0 0.0
          %652 = vmatpush2.msra.mxu0 0.0
          %653 = vmatprep.subr.mxu0 0.0
          %654 = vmatpush2.msra.mxu0 0.0
          %655 = vmatprep.subr.mxu0 0.0
          %656 = vmatpush2.msra.mxu0 0.0
          %657 = vmatprep.subr.mxu0 0.0
          %658 = vmatpush2.msra.mxu0 0.0
          %659 = vmatprep.subr.mxu0 0.0
          %660 = vmatpush2.msra.mxu0 0.0
          %661 = vmatprep.subr.mxu0 0.0
          %662 = vmatpush2.msra.mxu0 0.0
          %663 = vmatprep.subr.mxu0 0.0
          %664 = vmatpush2.msra.mxu0 0.0
          %665 = vmatprep.subr.mxu0 0.0
          %666 = vmatpush2.msra.mxu0 0.0
          %667 = vmatprep.subr.mxu0 0.0
          %668 = vmatpush2.msra.mxu0 0.0
          %669 = vmatprep.subr.mxu0 0.0
          %670 = vmatpush2.msra.mxu0 0.0
          %671 = vmatprep.subr.mxu0 0.0
          %672 = vmatpush2.msra.mxu0 0.0
          %673 = vmatprep.subr.mxu0 0.0
          %674 = vmatpush2.msra.mxu0 0.0
          %675 = vmatprep.subr.mxu0 0.0
          %676 = vmatpush2.msra.mxu0 0.0
          %677 = vmatprep.subr.mxu0 0.0
          %678 = vmatpush2.msra.mxu0 0.0
          %679 = vmatprep.mubr.f32.mxu0 0.0
          %680 = vmatmul.mubr.f32.gmra.mxu0 %v568
          %v681 = vpop.f32.mrf.mxu0
          %v682 = vadd.f32 %v564, %v681
          %v683 = vpop.f32.mrf.mxu0
          %684 = vmatprep.mubr.f32.mxu0 0.0
          %685 = vmatmul.mubr.f32.gmra.mxu0 %v571
          %v686 = vpop.f32.mrf.mxu0
          %v687 = vadd.f32 %v564, %v686
          %v688 = vpop.f32.mrf.mxu0
          %689 = vmatprep.mubr.f32.mxu0 0.0
          %690 = vmatmul.mubr.f32.gmra.mxu0 %v574
          %v691 = vpop.f32.mrf.mxu0
          %v692 = vadd.f32 %v564, %v691
          %v693 = vpop.f32.mrf.mxu0
          %694 = vmatprep.mubr.f32.mxu0 0.0
          %695 = vmatmul.mubr.f32.gmra.mxu0 %v577
          %v696 = vpop.f32.mrf.mxu0
          %v697 = vadd.f32 %v564, %v696
          %v698 = vpop.f32.mrf.mxu0
          %699 = vmatprep.mubr.f32.mxu0 0.0
          %700 = vmatmul.mubr.f32.gmra.mxu0 %v580
          %v701 = vpop.f32.mrf.mxu0
          %v702 = vadd.f32 %v564, %v701
          %v703 = vpop.f32.mrf.mxu0
          %704 = vmatprep.mubr.f32.mxu0 0.0
          %705 = vmatmul.mubr.f32.gmra.mxu0 %v583
          %v706 = vpop.f32.mrf.mxu0
          %v707 = vadd.f32 %v564, %v706
          %v708 = vpop.f32.mrf.mxu0
          %709 = vmatprep.mubr.f32.mxu0 0.0
          %710 = vmatmul.mubr.f32.gmra.mxu0 %v586
          %v711 = vpop.f32.mrf.mxu0
          %v712 = vadd.f32 %v564, %v711
          %v713 = vpop.f32.mrf.mxu0
          %714 = vmatprep.mubr.f32.mxu0 0.0
          %715 = vmatmul.mubr.f32.gmra.mxu0 %v589
          %v716 = vpop.f32.mrf.mxu0
          %v717 = vadd.f32 %v564, %v716
          %v718 = vpop.f32.mrf.mxu0
          %719 = vmatprep.mubr.f32.mxu0 0.0
          %720 = vmatmul.mubr.f32.gmra.mxu0 %v592
          %v721 = vpop.f32.mrf.mxu0
          %v722 = vadd.f32 %v564, %v721
          %v723 = vpop.f32.mrf.mxu0
          %724 = vmatprep.mubr.f32.mxu0 0.0
          %725 = vmatmul.mubr.f32.gmra.mxu0 %v595
          %v726 = vpop.f32.mrf.mxu0
          %v727 = vadd.f32 %v564, %v726
          %v728 = vpop.f32.mrf.mxu0
          %729 = vmatprep.mubr.f32.mxu0 0.0
          %730 = vmatmul.mubr.f32.gmra.mxu0 %v598
          %v731 = vpop.f32.mrf.mxu0
          %v732 = vadd.f32 %v564, %v731
          %v733 = vpop.f32.mrf.mxu0
          %734 = vmatprep.mubr.f32.mxu0 0.0
          %735 = vmatmul.mubr.f32.gmra.mxu0 %v601
          %v736 = vpop.f32.mrf.mxu0
          %v737 = vadd.f32 %v564, %v736
          %v738 = vpop.f32.mrf.mxu0
          %739 = vmatprep.mubr.f32.mxu0 0.0
          %740 = vmatmul.mubr.f32.gmra.mxu0 %v604
          %v741 = vpop.f32.mrf.mxu0
          %v742 = vadd.f32 %v564, %v741
          %v743 = vpop.f32.mrf.mxu0
          %744 = vmatprep.mubr.f32.mxu0 0.0
          %745 = vmatmul.mubr.f32.gmra.mxu0 %v607
          %v746 = vpop.f32.mrf.mxu0
          %v747 = vadd.f32 %v564, %v746
          %v748 = vpop.f32.mrf.mxu0
          %749 = vmatprep.mubr.f32.mxu0 0.0
          %750 = vmatmul.mubr.f32.gmra.mxu0 %v610
          %v751 = vpop.f32.mrf.mxu0
          %v752 = vadd.f32 %v564, %v751
          %v753 = vpop.f32.mrf.mxu0
          %754 = vmatprep.mubr.f32.mxu0 0.0
          %755 = vmatmul.mubr.f32.gmra.mxu0 %v613
          %v756 = vpop.f32.mrf.mxu0
          %v757 = vadd.f32 %v564, %v756
          %v758 = vpop.f32.mrf.mxu0
          %759 = vdwg.mxu0
          %v760 = vmax.f32 %v682, 0.0
          %v761 = vmax.f32 %v687, 0.0
          %v762 = vmax.f32 %v692, 0.0
          %v763 = vmax.f32 %v697, 0.0
          %v764 = vmax.f32 %v702, 0.0
          %v765 = vmax.f32 %v707, 0.0
          %v766 = vmax.f32 %v712, 0.0
          %v767 = vmax.f32 %v717, 0.0
          %v768 = vmax.f32 %v722, 0.0
          %v769 = vmax.f32 %v727, 0.0
          %v770 = vmax.f32 %v732, 0.0
          %v771 = vmax.f32 %v737, 0.0
          %v772 = vmax.f32 %v742, 0.0
          %v773 = vmax.f32 %v747, 0.0
          %v774 = vmax.f32 %v752, 0.0
          %v775 = vmax.f32 %v757, 0.0
          %v776 = vld [vmem:[%s3] sm:$0xf]
          %v777 = vld [vmem:[%s3 + $0x4] sm:$0xf]
          %v778 = vld [vmem:[%s3 + $0x8] sm:$0xf]
          %v779 = vld [vmem:[%s3 + $0xc] sm:$0xf]
          %v780 = vld [vmem:[%s3 + $0x10] sm:$0xf]
          %v781 = vld [vmem:[%s3 + $0x14] sm:$0xf]
          %v782 = vld [vmem:[%s3 + $0x18] sm:$0xf]
          %v783 = vld [vmem:[%s3 + $0x1c] sm:$0xf]
          %v784 = vunpack.c.l.bf16 %v776
          %v785 = vunpack.c.l.bf16 %v777
          %v786 = vunpack.c.l.bf16 %v778
          %v787 = vunpack.c.l.bf16 %v779
          %v788 = vunpack.c.l.bf16 %v780
          %v789 = vunpack.c.l.bf16 %v781
          %v790 = vunpack.c.l.bf16 %v782
          %v791 = vunpack.c.l.bf16 %v783
          %v792 = vld [vmem:[%s4] sm:$0x1]
          %v794 = vlaneseq
          %v795 = vshrl.u32 %v794, 7
          %v796 = vsub.s32 0, %v795
          %v797 = vrot.slane %v792, %v796
          %vm799 = vcmask 523264
          %v801 = vsel %vm799, %v760, 0
          %v804 = vsel %vm799, %v761, 0
          %v807 = vsel %vm799, %v762, 0
          %v810 = vsel %vm799, %v763, 0
          %v813 = vsel %vm799, %v764, 0
          %v816 = vsel %vm799, %v765, 0
          %v819 = vsel %vm799, %v766, 0
          %v822 = vsel %vm799, %v767, 0
          %v825 = vsel %vm799, %v768, 0
          %v828 = vsel %vm799, %v769, 0
          %v831 = vsel %vm799, %v770, 0
          %v834 = vsel %vm799, %v771, 0
          %v837 = vsel %vm799, %v772, 0
          %v840 = vsel %vm799, %v773, 0
          %v843 = vsel %vm799, %v774, 0
          %v846 = vsel %vm799, %v775, 0
          %848 = vmatprep.subr.mxu0 0.0
          %849 = vmatpush1.msra.mxu0 0.0
          %850 = vmatprep.subr.mxu0 0.0
          %851 = vmatpush1.msra.mxu0 0.0
          %852 = vmatprep.subr.mxu0 0.0
          %853 = vmatpush1.msra.mxu0 0.0
          %854 = vmatprep.subr.mxu0 0.0
          %855 = vmatpush1.msra.mxu0 0.0
          %856 = vmatprep.subr.mxu0 0.0
          %857 = vmatpush1.msra.mxu0 0.0
          %858 = vmatprep.subr.mxu0 0.0
          %859 = vmatpush1.msra.mxu0 0.0
          %860 = vmatprep.subr.mxu0 0.0
          %861 = vmatpush1.msra.mxu0 0.0
          %862 = vmatprep.subr.mxu0 0.0
          %863 = vmatpush1.msra.mxu0 0.0
          %864 = vmatprep.subr.mxu0 0.0
          %865 = vmatpush1.msra.mxu0 %v791
          %866 = vmatprep.subr.mxu0 0.0
          %867 = vmatpush1.msra.mxu0 %v790
          %868 = vmatprep.subr.mxu0 0.0
          %869 = vmatpush1.msra.mxu0 %v789
          %870 = vmatprep.subr.mxu0 0.0
          %871 = vmatpush1.msra.mxu0 %v788
          %872 = vmatprep.subr.mxu0 0.0
          %873 = vmatpush1.msra.mxu0 %v787
          %874 = vmatprep.subr.mxu0 0.0
          %875 = vmatpush1.msra.mxu0 %v786
          %876 = vmatprep.subr.mxu0 0.0
          %877 = vmatpush1.msra.mxu0 %v785
          %878 = vmatprep.subr.mxu0 0.0
          %879 = vmatpush1.msra.mxu0 %v784
          %880 = vmatprep.subr.mxu0 0.0
          %881 = vmatpush2.msra.mxu0 0.0
          %882 = vmatprep.subr.mxu0 0.0
          %883 = vmatpush2.msra.mxu0 0.0
          %884 = vmatprep.subr.mxu0 0.0
          %885 = vmatpush2.msra.mxu0 0.0
          %886 = vmatprep.subr.mxu0 0.0
          %887 = vmatpush2.msra.mxu0 0.0
          %888 = vmatprep.subr.mxu0 0.0
          %889 = vmatpush2.msra.mxu0 0.0
          %890 = vmatprep.subr.mxu0 0.0
          %891 = vmatpush2.msra.mxu0 0.0
          %892 = vmatprep.subr.mxu0 0.0
          %893 = vmatpush2.msra.mxu0 0.0
          %894 = vmatprep.subr.mxu0 0.0
          %895 = vmatpush2.msra.mxu0 0.0
          %896 = vmatprep.subr.mxu0 0.0
          %897 = vmatpush2.msra.mxu0 0.0
          %898 = vmatprep.subr.mxu0 0.0
          %899 = vmatpush2.msra.mxu0 0.0
          %900 = vmatprep.subr.mxu0 0.0
          %901 = vmatpush2.msra.mxu0 0.0
          %902 = vmatprep.subr.mxu0 0.0
          %903 = vmatpush2.msra.mxu0 0.0
          %904 = vmatprep.subr.mxu0 0.0
          %905 = vmatpush2.msra.mxu0 0.0
          %906 = vmatprep.subr.mxu0 0.0
          %907 = vmatpush2.msra.mxu0 0.0
          %908 = vmatprep.subr.mxu0 0.0
          %909 = vmatpush2.msra.mxu0 0.0
          %910 = vmatprep.subr.mxu0 0.0
          %911 = vmatpush2.msra.mxu0 0.0
          %912 = vmatprep.mubr.f32.mxu0 0.0
          %913 = vmatmul.mubr.f32.gmra.mxu0 %v801
          %v914 = vpop.f32.mrf.mxu0
          %v915 = vadd.f32 %v797, %v914
          %v916 = vpop.f32.mrf.mxu0
          %917 = vmatprep.mubr.f32.mxu0 0.0
          %918 = vmatmul.mubr.f32.gmra.mxu0 %v804
          %v919 = vpop.f32.mrf.mxu0
          %v920 = vadd.f32 %v797, %v919
          %v921 = vpop.f32.mrf.mxu0
          %922 = vmatprep.mubr.f32.mxu0 0.0
          %923 = vmatmul.mubr.f32.gmra.mxu0 %v807
          %v924 = vpop.f32.mrf.mxu0
          %v925 = vadd.f32 %v797, %v924
          %v926 = vpop.f32.mrf.mxu0
          %927 = vmatprep.mubr.f32.mxu0 0.0
          %928 = vmatmul.mubr.f32.gmra.mxu0 %v810
          %v929 = vpop.f32.mrf.mxu0
          %v930 = vadd.f32 %v797, %v929
          %v931 = vpop.f32.mrf.mxu0
          %932 = vmatprep.mubr.f32.mxu0 0.0
          %933 = vmatmul.mubr.f32.gmra.mxu0 %v813
          %v934 = vpop.f32.mrf.mxu0
          %v935 = vadd.f32 %v797, %v934
          %v936 = vpop.f32.mrf.mxu0
          %937 = vmatprep.mubr.f32.mxu0 0.0
          %938 = vmatmul.mubr.f32.gmra.mxu0 %v816
          %v939 = vpop.f32.mrf.mxu0
          %v940 = vadd.f32 %v797, %v939
          %v941 = vpop.f32.mrf.mxu0
          %942 = vmatprep.mubr.f32.mxu0 0.0
          %943 = vmatmul.mubr.f32.gmra.mxu0 %v819
          %v944 = vpop.f32.mrf.mxu0
          %v945 = vadd.f32 %v797, %v944
          %v946 = vpop.f32.mrf.mxu0
          %947 = vmatprep.mubr.f32.mxu0 0.0
          %948 = vmatmul.mubr.f32.gmra.mxu0 %v822
          %v949 = vpop.f32.mrf.mxu0
          %v950 = vadd.f32 %v797, %v949
          %v951 = vpop.f32.mrf.mxu0
          %952 = vmatprep.mubr.f32.mxu0 0.0
          %953 = vmatmul.mubr.f32.gmra.mxu0 %v825
          %v954 = vpop.f32.mrf.mxu0
          %v955 = vadd.f32 %v797, %v954
          %v956 = vpop.f32.mrf.mxu0
          %957 = vmatprep.mubr.f32.mxu0 0.0
          %958 = vmatmul.mubr.f32.gmra.mxu0 %v828
          %v959 = vpop.f32.mrf.mxu0
          %v960 = vadd.f32 %v797, %v959
          %v961 = vpop.f32.mrf.mxu0
          %962 = vmatprep.mubr.f32.mxu0 0.0
          %963 = vmatmul.mubr.f32.gmra.mxu0 %v831
          %v964 = vpop.f32.mrf.mxu0
          %v965 = vadd.f32 %v797, %v964
          %v966 = vpop.f32.mrf.mxu0
          %967 = vmatprep.mubr.f32.mxu0 0.0
          %968 = vmatmul.mubr.f32.gmra.mxu0 %v834
          %v969 = vpop.f32.mrf.mxu0
          %v970 = vadd.f32 %v797, %v969
          %v971 = vpop.f32.mrf.mxu0
          %972 = vmatprep.mubr.f32.mxu0 0.0
          %973 = vmatmul.mubr.f32.gmra.mxu0 %v837
          %v974 = vpop.f32.mrf.mxu0
          %v975 = vadd.f32 %v797, %v974
          %v976 = vpop.f32.mrf.mxu0
          %977 = vmatprep.mubr.f32.mxu0 0.0
          %978 = vmatmul.mubr.f32.gmra.mxu0 %v840
          %v979 = vpop.f32.mrf.mxu0
          %v980 = vadd.f32 %v797, %v979
          %v981 = vpop.f32.mrf.mxu0
          %982 = vmatprep.mubr.f32.mxu0 0.0
          %983 = vmatmul.mubr.f32.gmra.mxu0 %v843
          %v984 = vpop.f32.mrf.mxu0
          %v985 = vadd.f32 %v797, %v984
          %v986 = vpop.f32.mrf.mxu0
          %987 = vmatprep.mubr.f32.mxu0 0.0
          %988 = vmatmul.mubr.f32.gmra.mxu0 %v846
          %v989 = vpop.f32.mrf.mxu0
          %v990 = vadd.f32 %v797, %v989
          %v991 = vpop.f32.mrf.mxu0
          %992 = vdwg.mxu0
          %v993 = vmax.f32 %v915, 0.0
          %v994 = vmax.f32 %v920, 0.0
          %v995 = vmax.f32 %v925, 0.0
          %v996 = vmax.f32 %v930, 0.0
          %v997 = vmax.f32 %v935, 0.0
          %v998 = vmax.f32 %v940, 0.0
          %v999 = vmax.f32 %v945, 0.0
          %v1000 = vmax.f32 %v950, 0.0
          %v1001 = vmax.f32 %v955, 0.0
          %v1002 = vmax.f32 %v960, 0.0
          %v1003 = vmax.f32 %v965, 0.0
          %v1004 = vmax.f32 %v970, 0.0
          %v1005 = vmax.f32 %v975, 0.0
          %v1006 = vmax.f32 %v980, 0.0
          %v1007 = vmax.f32 %v985, 0.0
          %v1008 = vmax.f32 %v990, 0.0
          %1009 = vst [vmem:[#allocation2] sm:$0xff] %v993
          %1010 = vst [vmem:[#allocation2 + $0x8] sm:$0xff] %v994
          %1011 = vst [vmem:[#allocation2 + $0x10] sm:$0xff] %v995
          %1012 = vst [vmem:[#allocation2 + $0x18] sm:$0xff] %v996
          %1013 = vst [vmem:[#allocation2 + $0x20] sm:$0xff] %v997
          %1014 = vst [vmem:[#allocation2 + $0x28] sm:$0xff] %v998
          %1015 = vst [vmem:[#allocation2 + $0x30] sm:$0xff] %v999
          %1016 = vst [vmem:[#allocation2 + $0x38] sm:$0xff] %v1000
          %1017 = vst [vmem:[#allocation2 + $0x40] sm:$0xff] %v1001
          %1018 = vst [vmem:[#allocation2 + $0x48] sm:$0xff] %v1002
          %1019 = vst [vmem:[#allocation2 + $0x50] sm:$0xff] %v1003
          %1020 = vst [vmem:[#allocation2 + $0x58] sm:$0xff] %v1004
          %1021 = vst [vmem:[#allocation2 + $0x60] sm:$0xff] %v1005
          %1022 = vst [vmem:[#allocation2 + $0x68] sm:$0xff] %v1006
          %1023 = vst [vmem:[#allocation2 + $0x70] sm:$0xff] %v1007
          %1024 = vst [vmem:[#allocation2 + $0x78] sm:$0xff] %v1008
          %1025 = vst [vmem:[#allocation3] sm:$0xff] 0.0
        $region92: #{tpu_custom_call.1} parent=71 // pred_fallthru
          _
        %v1026 = vld [vmem:[#allocation2] sm:$0xff]
        %v1027 = vld [vmem:[#allocation2 + $0x8] sm:$0xff]
        %v1028 = vld [vmem:[#allocation2 + $0x10] sm:$0xff]
        %v1029 = vld [vmem:[#allocation2 + $0x18] sm:$0xff]
        %v1030 = vld [vmem:[#allocation2 + $0x20] sm:$0xff]
        %v1031 = vld [vmem:[#allocation2 + $0x28] sm:$0xff]
        %v1032 = vld [vmem:[#allocation2 + $0x30] sm:$0xff]
        %v1033 = vld [vmem:[#allocation2 + $0x38] sm:$0xff]
        %v1034 = vld [vmem:[#allocation2 + $0x40] sm:$0xff]
        %v1035 = vld [vmem:[#allocation2 + $0x48] sm:$0xff]
        %v1036 = vld [vmem:[#allocation2 + $0x50] sm:$0xff]
        %v1037 = vld [vmem:[#allocation2 + $0x58] sm:$0xff]
        %v1038 = vld [vmem:[#allocation2 + $0x60] sm:$0xff]
        %v1039 = vld [vmem:[#allocation2 + $0x68] sm:$0xff]
        %v1040 = vld [vmem:[#allocation2 + $0x70] sm:$0xff]
        %v1041 = vld [vmem:[#allocation2 + $0x78] sm:$0xff]
        %v1042 = vld [vmem:[%s467] sm:$0xff]
        %v1043 = vld [vmem:[%s467 + $0x8] sm:$0xff]
        %v1044 = vld [vmem:[%s467 + $0x10] sm:$0xff]
        %v1045 = vld [vmem:[%s467 + $0x18] sm:$0xff]
        %v1046 = vld [vmem:[%s467 + $0x20] sm:$0xff]
        %v1047 = vld [vmem:[%s467 + $0x28] sm:$0xff]
        %v1048 = vld [vmem:[%s467 + $0x30] sm:$0xff]
        %v1049 = vld [vmem:[%s467 + $0x38] sm:$0xff]
        %v1050 = vld [vmem:[%s467 + $0x40] sm:$0xff]
        %v1051 = vld [vmem:[%s467 + $0x48] sm:$0xff]
        %v1052 = vld [vmem:[%s467 + $0x50] sm:$0xff]
        %v1053 = vld [vmem:[%s467 + $0x58] sm:$0xff]
        %v1054 = vld [vmem:[%s467 + $0x60] sm:$0xff]
        %v1055 = vld [vmem:[%s467 + $0x68] sm:$0xff]
        %v1056 = vld [vmem:[%s467 + $0x70] sm:$0xff]
        %v1057 = vld [vmem:[%s467 + $0x78] sm:$0xff]
        %v1058 = vunpack.c.l.bf16 %v1042
        %v1059 = vunpack.c.h.bf16 %v1042
        %v1060 = vunpack.c.l.bf16 %v1043
        %v1061 = vunpack.c.h.bf16 %v1043
        %v1062 = vunpack.c.l.bf16 %v1044
        %v1063 = vunpack.c.h.bf16 %v1044
        %v1064 = vunpack.c.l.bf16 %v1045
        %v1065 = vunpack.c.h.bf16 %v1045
        %v1066 = vunpack.c.l.bf16 %v1046
        %v1067 = vunpack.c.h.bf16 %v1046
        %v1068 = vunpack.c.l.bf16 %v1047
        %v1069 = vunpack.c.h.bf16 %v1047
        %v1070 = vunpack.c.l.bf16 %v1048
        %v1071 = vunpack.c.h.bf16 %v1048
        %v1072 = vunpack.c.l.bf16 %v1049
        %v1073 = vunpack.c.h.bf16 %v1049
        %v1074 = vunpack.c.l.bf16 %v1050
        %v1075 = vunpack.c.h.bf16 %v1050
        %v1076 = vunpack.c.l.bf16 %v1051
        %v1077 = vunpack.c.h.bf16 %v1051
        %v1078 = vunpack.c.l.bf16 %v1052
        %v1079 = vunpack.c.h.bf16 %v1052
        %v1080 = vunpack.c.l.bf16 %v1053
        %v1081 = vunpack.c.h.bf16 %v1053
        %v1082 = vunpack.c.l.bf16 %v1054
        %v1083 = vunpack.c.h.bf16 %v1054
        %v1084 = vunpack.c.l.bf16 %v1055
        %v1085 = vunpack.c.h.bf16 %v1055
        %v1086 = vunpack.c.l.bf16 %v1056
        %v1087 = vunpack.c.h.bf16 %v1056
        %v1088 = vunpack.c.l.bf16 %v1057
        %v1089 = vunpack.c.h.bf16 %v1057
        %v1090 = vld [vmem:[%s535] sm:$0x3]
        %v1092 = vlaneseq
        %v1093 = vshrl.u32 %v1092, 7
        %v1094 = vsub.s32 0, %v1093
        %v1095 = vrot.slane %v1090, %v1094
        %v1096 = vlaneseq
        %v1097 = vshrl.u32 %v1096, 7
        %v1098 = vsub.s32 1, %v1097
        %v1099 = vrot.slane %v1090, %v1098
        %1102 = vmatprep.subr.mxu0 %v1089
        %1103 = vmatpush1.msra.mxu0 %v1088
        %1104 = vmatprep.subr.mxu0 %v1087
        %1105 = vmatpush1.msra.mxu0 %v1086
        %1106 = vmatprep.subr.mxu0 %v1085
        %1107 = vmatpush1.msra.mxu0 %v1084
        %1108 = vmatprep.subr.mxu0 %v1083
        %1109 = vmatpush1.msra.mxu0 %v1082
        %1110 = vmatprep.subr.mxu0 %v1081
        %1111 = vmatpush1.msra.mxu0 %v1080
        %1112 = vmatprep.subr.mxu0 %v1079
        %1113 = vmatpush1.msra.mxu0 %v1078
        %1114 = vmatprep.subr.mxu0 %v1077
        %1115 = vmatpush1.msra.mxu0 %v1076
        %1116 = vmatprep.subr.mxu0 %v1075
        %1117 = vmatpush1.msra.mxu0 %v1074
        %1118 = vmatprep.subr.mxu0 %v1073
        %1119 = vmatpush1.msra.mxu0 %v1072
        %1120 = vmatprep.subr.mxu0 %v1071
        %1121 = vmatpush1.msra.mxu0 %v1070
        %1122 = vmatprep.subr.mxu0 %v1069
        %1123 = vmatpush1.msra.mxu0 %v1068
        %1124 = vmatprep.subr.mxu0 %v1067
        %1125 = vmatpush1.msra.mxu0 %v1066
        %1126 = vmatprep.subr.mxu0 %v1065
        %1127 = vmatpush1.msra.mxu0 %v1064
        %1128 = vmatprep.subr.mxu0 %v1063
        %1129 = vmatpush1.msra.mxu0 %v1062
        %1130 = vmatprep.subr.mxu0 %v1061
        %1131 = vmatpush1.msra.mxu0 %v1060
        %1132 = vmatprep.subr.mxu0 %v1059
        %1133 = vmatpush1.msra.mxu0 %v1058
        %1134 = vmatprep.subr.mxu0 0.0
        %1135 = vmatpush2.msra.mxu0 0.0
        %1136 = vmatprep.subr.mxu0 0.0
        %1137 = vmatpush2.msra.mxu0 0.0
        %1138 = vmatprep.subr.mxu0 0.0
        %1139 = vmatpush2.msra.mxu0 0.0
        %1140 = vmatprep.subr.mxu0 0.0
        %1141 = vmatpush2.msra.mxu0 0.0
        %1142 = vmatprep.subr.mxu0 0.0
        %1143 = vmatpush2.msra.mxu0 0.0
        %1144 = vmatprep.subr.mxu0 0.0
        %1145 = vmatpush2.msra.mxu0 0.0
        %1146 = vmatprep.subr.mxu0 0.0
        %1147 = vmatpush2.msra.mxu0 0.0
        %1148 = vmatprep.subr.mxu0 0.0
        %1149 = vmatpush2.msra.mxu0 0.0
        %1150 = vmatprep.subr.mxu0 0.0
        %1151 = vmatpush2.msra.mxu0 0.0
        %1152 = vmatprep.subr.mxu0 0.0
        %1153 = vmatpush2.msra.mxu0 0.0
        %1154 = vmatprep.subr.mxu0 0.0
        %1155 = vmatpush2.msra.mxu0 0.0
        %1156 = vmatprep.subr.mxu0 0.0
        %1157 = vmatpush2.msra.mxu0 0.0
        %1158 = vmatprep.subr.mxu0 0.0
        %1159 = vmatpush2.msra.mxu0 0.0
        %1160 = vmatprep.subr.mxu0 0.0
        %1161 = vmatpush2.msra.mxu0 0.0
        %1162 = vmatprep.subr.mxu0 0.0
        %1163 = vmatpush2.msra.mxu0 0.0
        %1164 = vmatprep.subr.mxu0 0.0
        %1165 = vmatpush2.msra.mxu0 0.0
        %1166 = vmatprep.mubr.f32.mxu0 0.0
        %1167 = vmatmul.mubr.f32.gmra.mxu0 %v1026
        %v1168 = vpop.f32.mrf.mxu0
        %v1169 = vadd.f32 %v1095, %v1168
        %v1170 = vpop.f32.mrf.mxu0
        %v1171 = vadd.f32 %v1099, %v1170
        %1172 = vmatprep.mubr.f32.mxu0 0.0
        %1173 = vmatmul.mubr.f32.gmra.mxu0 %v1027
        %v1174 = vpop.f32.mrf.mxu0
        %v1175 = vadd.f32 %v1095, %v1174
        %v1176 = vpop.f32.mrf.mxu0
        %v1177 = vadd.f32 %v1099, %v1176
        %1178 = vmatprep.mubr.f32.mxu0 0.0
        %1179 = vmatmul.mubr.f32.gmra.mxu0 %v1028
        %v1180 = vpop.f32.mrf.mxu0
        %v1181 = vadd.f32 %v1095, %v1180
        %v1182 = vpop.f32.mrf.mxu0
        %v1183 = vadd.f32 %v1099, %v1182
        %1184 = vmatprep.mubr.f32.mxu0 0.0
        %1185 = vmatmul.mubr.f32.gmra.mxu0 %v1029
        %v1186 = vpop.f32.mrf.mxu0
        %v1187 = vadd.f32 %v1095, %v1186
        %v1188 = vpop.f32.mrf.mxu0
        %v1189 = vadd.f32 %v1099, %v1188
        %1190 = vmatprep.mubr.f32.mxu0 0.0
        %1191 = vmatmul.mubr.f32.gmra.mxu0 %v1030
        %v1192 = vpop.f32.mrf.mxu0
        %v1193 = vadd.f32 %v1095, %v1192
        %v1194 = vpop.f32.mrf.mxu0
        %v1195 = vadd.f32 %v1099, %v1194
        %1196 = vmatprep.mubr.f32.mxu0 0.0
        %1197 = vmatmul.mubr.f32.gmra.mxu0 %v1031
        %v1198 = vpop.f32.mrf.mxu0
        %v1199 = vadd.f32 %v1095, %v1198
        %v1200 = vpop.f32.mrf.mxu0
        %v1201 = vadd.f32 %v1099, %v1200
        %1202 = vmatprep.mubr.f32.mxu0 0.0
        %1203 = vmatmul.mubr.f32.gmra.mxu0 %v1032
        %v1204 = vpop.f32.mrf.mxu0
        %v1205 = vadd.f32 %v1095, %v1204
        %v1206 = vpop.f32.mrf.mxu0
        %v1207 = vadd.f32 %v1099, %v1206
        %1208 = vmatprep.mubr.f32.mxu0 0.0
        %1209 = vmatmul.mubr.f32.gmra.mxu0 %v1033
        %v1210 = vpop.f32.mrf.mxu0
        %v1211 = vadd.f32 %v1095, %v1210
        %v1212 = vpop.f32.mrf.mxu0
        %v1213 = vadd.f32 %v1099, %v1212
        %1214 = vmatprep.mubr.f32.mxu0 0.0
        %1215 = vmatmul.mubr.f32.gmra.mxu0 %v1034
        %v1216 = vpop.f32.mrf.mxu0
        %v1217 = vadd.f32 %v1095, %v1216
        %v1218 = vpop.f32.mrf.mxu0
        %v1219 = vadd.f32 %v1099, %v1218
        %1220 = vmatprep.mubr.f32.mxu0 0.0
        %1221 = vmatmul.mubr.f32.gmra.mxu0 %v1035
        %v1222 = vpop.f32.mrf.mxu0
        %v1223 = vadd.f32 %v1095, %v1222
        %v1224 = vpop.f32.mrf.mxu0
        %v1225 = vadd.f32 %v1099, %v1224
        %1226 = vmatprep.mubr.f32.mxu0 0.0
        %1227 = vmatmul.mubr.f32.gmra.mxu0 %v1036
        %v1228 = vpop.f32.mrf.mxu0
        %v1229 = vadd.f32 %v1095, %v1228
        %v1230 = vpop.f32.mrf.mxu0
        %v1231 = vadd.f32 %v1099, %v1230
        %1232 = vmatprep.mubr.f32.mxu0 0.0
        %1233 = vmatmul.mubr.f32.gmra.mxu0 %v1037
        %v1234 = vpop.f32.mrf.mxu0
        %v1235 = vadd.f32 %v1095, %v1234
        %v1236 = vpop.f32.mrf.mxu0
        %v1237 = vadd.f32 %v1099, %v1236
        %1238 = vmatprep.mubr.f32.mxu0 0.0
        %1239 = vmatmul.mubr.f32.gmra.mxu0 %v1038
        %v1240 = vpop.f32.mrf.mxu0
        %v1241 = vadd.f32 %v1095, %v1240
        %v1242 = vpop.f32.mrf.mxu0
        %v1243 = vadd.f32 %v1099, %v1242
        %1244 = vmatprep.mubr.f32.mxu0 0.0
        %1245 = vmatmul.mubr.f32.gmra.mxu0 %v1039
        %v1246 = vpop.f32.mrf.mxu0
        %v1247 = vadd.f32 %v1095, %v1246
        %v1248 = vpop.f32.mrf.mxu0
        %v1249 = vadd.f32 %v1099, %v1248
        %1250 = vmatprep.mubr.f32.mxu0 0.0
        %1251 = vmatmul.mubr.f32.gmra.mxu0 %v1040
        %v1252 = vpop.f32.mrf.mxu0
        %v1253 = vadd.f32 %v1095, %v1252
        %v1254 = vpop.f32.mrf.mxu0
        %v1255 = vadd.f32 %v1099, %v1254
        %1256 = vmatprep.mubr.f32.mxu0 0.0
        %1257 = vmatmul.mubr.f32.gmra.mxu0 %v1041
        %v1258 = vpop.f32.mrf.mxu0
        %v1259 = vadd.f32 %v1095, %v1258
        %v1260 = vpop.f32.mrf.mxu0
        %v1261 = vadd.f32 %v1099, %v1260
        %1262 = vdwg.mxu0
        %v1263 = vmax.f32 %v1169, 0.0
        %v1264 = vmax.f32 %v1171, 0.0
        %v1265 = vmax.f32 %v1175, 0.0
        %v1266 = vmax.f32 %v1177, 0.0
        %v1267 = vmax.f32 %v1181, 0.0
        %v1268 = vmax.f32 %v1183, 0.0
        %v1269 = vmax.f32 %v1187, 0.0
        %v1270 = vmax.f32 %v1189, 0.0
        %v1271 = vmax.f32 %v1193, 0.0
        %v1272 = vmax.f32 %v1195, 0.0
        %v1273 = vmax.f32 %v1199, 0.0
        %v1274 = vmax.f32 %v1201, 0.0
        %v1275 = vmax.f32 %v1205, 0.0
        %v1276 = vmax.f32 %v1207, 0.0
        %v1277 = vmax.f32 %v1211, 0.0
        %v1278 = vmax.f32 %v1213, 0.0
        %v1279 = vmax.f32 %v1217, 0.0
        %v1280 = vmax.f32 %v1219, 0.0
        %v1281 = vmax.f32 %v1223, 0.0
        %v1282 = vmax.f32 %v1225, 0.0
        %v1283 = vmax.f32 %v1229, 0.0
        %v1284 = vmax.f32 %v1231, 0.0
        %v1285 = vmax.f32 %v1235, 0.0
        %v1286 = vmax.f32 %v1237, 0.0
        %v1287 = vmax.f32 %v1241, 0.0
        %v1288 = vmax.f32 %v1243, 0.0
        %v1289 = vmax.f32 %v1247, 0.0
        %v1290 = vmax.f32 %v1249, 0.0
        %v1291 = vmax.f32 %v1253, 0.0
        %v1292 = vmax.f32 %v1255, 0.0
        %v1293 = vmax.f32 %v1259, 0.0
        %v1294 = vmax.f32 %v1261, 0.0
        %v1295 = vmax.f32 %v1263, %v1265
        %v1296 = vmax.f32 %v1295, %v1267
        %v1297 = vmax.f32 %v1296, %v1269
        %v1298 = vmax.f32 %v1297, %v1271
        %v1299 = vmax.f32 %v1298, %v1273
        %v1300 = vmax.f32 %v1299, %v1275
        %v1301 = vmax.f32 %v1300, %v1277
        %v1302 = vrot.slane %v1301, 4
        %v1303 = vmax.f32 %v1301, %v1302
        %v1304 = vrot.slane %v1303, 2
        %v1305 = vmax.f32 %v1303, %v1304
        %v1306 = vrot.slane %v1305, 1
        %v1307 = vmax.f32 %v1305, %v1306
        %v1308 = vmax.f32 %v1264, %v1266
        %v1309 = vmax.f32 %v1308, %v1268
        %v1310 = vmax.f32 %v1309, %v1270
        %v1311 = vmax.f32 %v1310, %v1272
        %v1312 = vmax.f32 %v1311, %v1274
        %v1313 = vmax.f32 %v1312, %v1276
        %v1314 = vmax.f32 %v1313, %v1278
        %v1315 = vrot.slane %v1314, 4
        %v1316 = vmax.f32 %v1314, %v1315
        %v1317 = vrot.slane %v1316, 2
        %v1318 = vmax.f32 %v1316, %v1317
        %v1319 = vrot.slane %v1318, 1
        %v1320 = vmax.f32 %v1318, %v1319
        %v1321 = vmax.f32 %v1279, %v1281
        %v1322 = vmax.f32 %v1321, %v1283
        %v1323 = vmax.f32 %v1322, %v1285
        %v1324 = vmax.f32 %v1323, %v1287
        %v1325 = vmax.f32 %v1324, %v1289
        %v1326 = vmax.f32 %v1325, %v1291
        %v1327 = vmax.f32 %v1326, %v1293
        %v1328 = vrot.slane %v1327, 4
        %v1329 = vmax.f32 %v1327, %v1328
        %v1330 = vrot.slane %v1329, 2
        %v1331 = vmax.f32 %v1329, %v1330
        %v1332 = vrot.slane %v1331, 1
        %v1333 = vmax.f32 %v1331, %v1332
        %v1334 = vmax.f32 %v1280, %v1282
        %v1335 = vmax.f32 %v1334, %v1284
        %v1336 = vmax.f32 %v1335, %v1286
        %v1337 = vmax.f32 %v1336, %v1288
        %v1338 = vmax.f32 %v1337, %v1290
        %v1339 = vmax.f32 %v1338, %v1292
        %v1340 = vmax.f32 %v1339, %v1294
        %v1341 = vrot.slane %v1340, 4
        %v1342 = vmax.f32 %v1340, %v1341
        %v1343 = vrot.slane %v1342, 2
        %v1344 = vmax.f32 %v1342, %v1343
        %v1345 = vrot.slane %v1344, 1
        %v1346 = vmax.f32 %v1344, %v1345
        %v1347 = vld [vmem:[#allocation3] sm:$0xff]
        %v1348 = vld [vmem:[%s476] sm:$0xff]
        %v1349 = vld [vmem:[%s476 + $0x8] sm:$0xff]
        %v1350 = vld [vmem:[%s476 + $0x10] sm:$0xff]
        %v1351 = vld [vmem:[%s476 + $0x18] sm:$0xff]
        %v1352 = vld [vmem:[%s476 + $0x20] sm:$0xff]
        %v1353 = vld [vmem:[%s476 + $0x28] sm:$0xff]
        %v1354 = vld [vmem:[%s476 + $0x30] sm:$0xff]
        %v1355 = vld [vmem:[%s476 + $0x38] sm:$0xff]
        %v1356 = vld [vmem:[%s476 + $0x40] sm:$0xff]
        %v1357 = vld [vmem:[%s476 + $0x48] sm:$0xff]
        %v1358 = vld [vmem:[%s476 + $0x50] sm:$0xff]
        %v1359 = vld [vmem:[%s476 + $0x58] sm:$0xff]
        %v1360 = vld [vmem:[%s476 + $0x60] sm:$0xff]
        %v1361 = vld [vmem:[%s476 + $0x68] sm:$0xff]
        %v1362 = vld [vmem:[%s476 + $0x70] sm:$0xff]
        %v1363 = vld [vmem:[%s476 + $0x78] sm:$0xff]
        %v1364 = vld [vmem:[%s476 + $0x80] sm:$0xff]
        %v1365 = vld [vmem:[%s476 + $0x88] sm:$0xff]
        %v1366 = vld [vmem:[%s476 + $0x90] sm:$0xff]
        %v1367 = vld [vmem:[%s476 + $0x98] sm:$0xff]
        %v1368 = vld [vmem:[%s476 + $0xa0] sm:$0xff]
        %v1369 = vld [vmem:[%s476 + $0xa8] sm:$0xff]
        %v1370 = vld [vmem:[%s476 + $0xb0] sm:$0xff]
        %v1371 = vld [vmem:[%s476 + $0xb8] sm:$0xff]
        %v1372 = vld [vmem:[%s476 + $0xc0] sm:$0xff]
        %v1373 = vld [vmem:[%s476 + $0xc8] sm:$0xff]
        %v1374 = vld [vmem:[%s476 + $0xd0] sm:$0xff]
        %v1375 = vld [vmem:[%s476 + $0xd8] sm:$0xff]
        %v1376 = vld [vmem:[%s476 + $0xe0] sm:$0xff]
        %v1377 = vld [vmem:[%s476 + $0xe8] sm:$0xff]
        %v1378 = vld [vmem:[%s476 + $0xf0] sm:$0xff]
        %v1379 = vld [vmem:[%s476 + $0xf8] sm:$0xff]
        %v1380 = vld [vmem:[%s476 + $0x100] sm:$0xff]
        %v1381 = vld [vmem:[%s476 + $0x108] sm:$0xff]
        %v1382 = vld [vmem:[%s476 + $0x110] sm:$0xff]
        %v1383 = vld [vmem:[%s476 + $0x118] sm:$0xff]
        %v1384 = vld [vmem:[%s476 + $0x120] sm:$0xff]
        %v1385 = vld [vmem:[%s476 + $0x128] sm:$0xff]
        %v1386 = vld [vmem:[%s476 + $0x130] sm:$0xff]
        %v1387 = vld [vmem:[%s476 + $0x138] sm:$0xff]
        %v1388 = vld [vmem:[%s476 + $0x140] sm:$0xff]
        %v1389 = vld [vmem:[%s476 + $0x148] sm:$0xff]
        %v1390 = vld [vmem:[%s476 + $0x150] sm:$0xff]
        %v1391 = vld [vmem:[%s476 + $0x158] sm:$0xff]
        %v1392 = vld [vmem:[%s476 + $0x160] sm:$0xff]
        %v1393 = vld [vmem:[%s476 + $0x168] sm:$0xff]
        %v1394 = vld [vmem:[%s476 + $0x170] sm:$0xff]
        %v1395 = vld [vmem:[%s476 + $0x178] sm:$0xff]
        %v1396 = vld [vmem:[%s476 + $0x180] sm:$0xff]
        %v1397 = vld [vmem:[%s476 + $0x188] sm:$0xff]
        %v1398 = vld [vmem:[%s476 + $0x190] sm:$0xff]
        %v1399 = vld [vmem:[%s476 + $0x198] sm:$0xff]
        %v1400 = vld [vmem:[%s476 + $0x1a0] sm:$0xff]
        %v1401 = vld [vmem:[%s476 + $0x1a8] sm:$0xff]
        %v1402 = vld [vmem:[%s476 + $0x1b0] sm:$0xff]
        %v1403 = vld [vmem:[%s476 + $0x1b8] sm:$0xff]
        %v1404 = vld [vmem:[%s476 + $0x1c0] sm:$0xff]
        %v1405 = vld [vmem:[%s476 + $0x1c8] sm:$0xff]
        %v1406 = vld [vmem:[%s476 + $0x1d0] sm:$0xff]
        %v1407 = vld [vmem:[%s476 + $0x1d8] sm:$0xff]
        %v1408 = vld [vmem:[%s476 + $0x1e0] sm:$0xff]
        %v1409 = vld [vmem:[%s476 + $0x1e8] sm:$0xff]
        %v1410 = vld [vmem:[%s476 + $0x1f0] sm:$0xff]
        %v1411 = vld [vmem:[%s476 + $0x1f8] sm:$0xff]
        %v1412 = vunpack.c.l.bf16 %v1348
        %v1413 = vunpack.c.h.bf16 %v1348
        %v1414 = vunpack.c.l.bf16 %v1349
        %v1415 = vunpack.c.h.bf16 %v1349
        %v1416 = vunpack.c.l.bf16 %v1350
        %v1417 = vunpack.c.h.bf16 %v1350
        %v1418 = vunpack.c.l.bf16 %v1351
        %v1419 = vunpack.c.h.bf16 %v1351
        %v1420 = vunpack.c.l.bf16 %v1352
        %v1421 = vunpack.c.h.bf16 %v1352
        %v1422 = vunpack.c.l.bf16 %v1353
        %v1423 = vunpack.c.h.bf16 %v1353
        %v1424 = vunpack.c.l.bf16 %v1354
        %v1425 = vunpack.c.h.bf16 %v1354
        %v1426 = vunpack.c.l.bf16 %v1355
        %v1427 = vunpack.c.h.bf16 %v1355
        %v1428 = vunpack.c.l.bf16 %v1356
        %v1429 = vunpack.c.h.bf16 %v1356
        %v1430 = vunpack.c.l.bf16 %v1357
        %v1431 = vunpack.c.h.bf16 %v1357
        %v1432 = vunpack.c.l.bf16 %v1358
        %v1433 = vunpack.c.h.bf16 %v1358
        %v1434 = vunpack.c.l.bf16 %v1359
        %v1435 = vunpack.c.h.bf16 %v1359
        %v1436 = vunpack.c.l.bf16 %v1360
        %v1437 = vunpack.c.h.bf16 %v1360
        %v1438 = vunpack.c.l.bf16 %v1361
        %v1439 = vunpack.c.h.bf16 %v1361
        %v1440 = vunpack.c.l.bf16 %v1362
        %v1441 = vunpack.c.h.bf16 %v1362
        %v1442 = vunpack.c.l.bf16 %v1363
        %v1443 = vunpack.c.h.bf16 %v1363
        %v1444 = vunpack.c.l.bf16 %v1364
        %v1445 = vunpack.c.h.bf16 %v1364
        %v1446 = vunpack.c.l.bf16 %v1365
        %v1447 = vunpack.c.h.bf16 %v1365
        %v1448 = vunpack.c.l.bf16 %v1366
        %v1449 = vunpack.c.h.bf16 %v1366
        %v1450 = vunpack.c.l.bf16 %v1367
        %v1451 = vunpack.c.h.bf16 %v1367
        %v1452 = vunpack.c.l.bf16 %v1368
        %v1453 = vunpack.c.h.bf16 %v1368
        %v1454 = vunpack.c.l.bf16 %v1369
        %v1455 = vunpack.c.h.bf16 %v1369
        %v1456 = vunpack.c.l.bf16 %v1370
        %v1457 = vunpack.c.h.bf16 %v1370
        %v1458 = vunpack.c.l.bf16 %v1371
        %v1459 = vunpack.c.h.bf16 %v1371
        %v1460 = vunpack.c.l.bf16 %v1372
        %v1461 = vunpack.c.h.bf16 %v1372
        %v1462 = vunpack.c.l.bf16 %v1373
        %v1463 = vunpack.c.h.bf16 %v1373
        %v1464 = vunpack.c.l.bf16 %v1374
        %v1465 = vunpack.c.h.bf16 %v1374
        %v1466 = vunpack.c.l.bf16 %v1375
        %v1467 = vunpack.c.h.bf16 %v1375
        %v1468 = vunpack.c.l.bf16 %v1376
        %v1469 = vunpack.c.h.bf16 %v1376
        %v1470 = vunpack.c.l.bf16 %v1377
        %v1471 = vunpack.c.h.bf16 %v1377
        %v1472 = vunpack.c.l.bf16 %v1378
        %v1473 = vunpack.c.h.bf16 %v1378
        %v1474 = vunpack.c.l.bf16 %v1379
        %v1475 = vunpack.c.h.bf16 %v1379
        %v1476 = vunpack.c.l.bf16 %v1380
        %v1477 = vunpack.c.h.bf16 %v1380
        %v1478 = vunpack.c.l.bf16 %v1381
        %v1479 = vunpack.c.h.bf16 %v1381
        %v1480 = vunpack.c.l.bf16 %v1382
        %v1481 = vunpack.c.h.bf16 %v1382
        %v1482 = vunpack.c.l.bf16 %v1383
        %v1483 = vunpack.c.h.bf16 %v1383
        %v1484 = vunpack.c.l.bf16 %v1384
        %v1485 = vunpack.c.h.bf16 %v1384
        %v1486 = vunpack.c.l.bf16 %v1385
        %v1487 = vunpack.c.h.bf16 %v1385
        %v1488 = vunpack.c.l.bf16 %v1386
        %v1489 = vunpack.c.h.bf16 %v1386
        %v1490 = vunpack.c.l.bf16 %v1387
        %v1491 = vunpack.c.h.bf16 %v1387
        %v1492 = vunpack.c.l.bf16 %v1388
        %v1493 = vunpack.c.h.bf16 %v1388
        %v1494 = vunpack.c.l.bf16 %v1389
        %v1495 = vunpack.c.h.bf16 %v1389
        %v1496 = vunpack.c.l.bf16 %v1390
        %v1497 = vunpack.c.h.bf16 %v1390
        %v1498 = vunpack.c.l.bf16 %v1391
        %v1499 = vunpack.c.h.bf16 %v1391
        %v1500 = vunpack.c.l.bf16 %v1392
        %v1501 = vunpack.c.h.bf16 %v1392
        %v1502 = vunpack.c.l.bf16 %v1393
        %v1503 = vunpack.c.h.bf16 %v1393
        %v1504 = vunpack.c.l.bf16 %v1394
        %v1505 = vunpack.c.h.bf16 %v1394
        %v1506 = vunpack.c.l.bf16 %v1395
        %v1507 = vunpack.c.h.bf16 %v1395
        %v1508 = vunpack.c.l.bf16 %v1396
        %v1509 = vunpack.c.h.bf16 %v1396
        %v1510 = vunpack.c.l.bf16 %v1397
        %v1511 = vunpack.c.h.bf16 %v1397
        %v1512 = vunpack.c.l.bf16 %v1398
        %v1513 = vunpack.c.h.bf16 %v1398
        %v1514 = vunpack.c.l.bf16 %v1399
        %v1515 = vunpack.c.h.bf16 %v1399
        %v1516 = vunpack.c.l.bf16 %v1400
        %v1517 = vunpack.c.h.bf16 %v1400
        %v1518 = vunpack.c.l.bf16 %v1401
        %v1519 = vunpack.c.h.bf16 %v1401
        %v1520 = vunpack.c.l.bf16 %v1402
        %v1521 = vunpack.c.h.bf16 %v1402
        %v1522 = vunpack.c.l.bf16 %v1403
        %v1523 = vunpack.c.h.bf16 %v1403
        %v1524 = vunpack.c.l.bf16 %v1404
        %v1525 = vunpack.c.h.bf16 %v1404
        %v1526 = vunpack.c.l.bf16 %v1405
        %v1527 = vunpack.c.h.bf16 %v1405
        %v1528 = vunpack.c.l.bf16 %v1406
        %v1529 = vunpack.c.h.bf16 %v1406
        %v1530 = vunpack.c.l.bf16 %v1407
        %v1531 = vunpack.c.h.bf16 %v1407
        %v1532 = vunpack.c.l.bf16 %v1408
        %v1533 = vunpack.c.h.bf16 %v1408
        %v1534 = vunpack.c.l.bf16 %v1409
        %v1535 = vunpack.c.h.bf16 %v1409
        %v1536 = vunpack.c.l.bf16 %v1410
        %v1537 = vunpack.c.h.bf16 %v1410
        %v1538 = vunpack.c.l.bf16 %v1411
        %v1539 = vunpack.c.h.bf16 %v1411
        %vm1544 = vcmask 1041409
        %v1545 = vsel %vm1544, %v1333, %v1307
        %v1546 = vsel %vm1544, %v1346, %v1320
        %1549 = vmatprep.subr.mxu0 %v1473
        %1550 = vmatpush1.msra.mxu0 %v1472
        %1551 = vmatprep.subr.mxu0 %v1469
        %1552 = vmatpush1.msra.mxu0 %v1468
        %1553 = vmatprep.subr.mxu0 %v1465
        %1554 = vmatpush1.msra.mxu0 %v1464
        %1555 = vmatprep.subr.mxu0 %v1461
        %1556 = vmatpush1.msra.mxu0 %v1460
        %1557 = vmatprep.subr.mxu0 %v1457
        %1558 = vmatpush1.msra.mxu0 %v1456
        %1559 = vmatprep.subr.mxu0 %v1453
        %1560 = vmatpush1.msra.mxu0 %v1452
        %1561 = vmatprep.subr.mxu0 %v1449
        %1562 = vmatpush1.msra.mxu0 %v1448
        %1563 = vmatprep.subr.mxu0 %v1445
        %1564 = vmatpush1.msra.mxu0 %v1444
        %1565 = vmatprep.subr.mxu0 %v1441
        %1566 = vmatpush1.msra.mxu0 %v1440
        %1567 = vmatprep.subr.mxu0 %v1437
        %1568 = vmatpush1.msra.mxu0 %v1436
        %1569 = vmatprep.subr.mxu0 %v1433
        %1570 = vmatpush1.msra.mxu0 %v1432
        %1571 = vmatprep.subr.mxu0 %v1429
        %1572 = vmatpush1.msra.mxu0 %v1428
        %1573 = vmatprep.subr.mxu0 %v1425
        %1574 = vmatpush1.msra.mxu0 %v1424
        %1575 = vmatprep.subr.mxu0 %v1421
        %1576 = vmatpush1.msra.mxu0 %v1420
        %1577 = vmatprep.subr.mxu0 %v1417
        %1578 = vmatpush1.msra.mxu0 %v1416
        %1579 = vmatprep.subr.mxu0 %v1413
        %1580 = vmatpush1.msra.mxu0 %v1412
        %1581 = vmatprep.subr.mxu0 %v1537
        %1582 = vmatpush2.msra.mxu0 %v1536
        %1583 = vmatprep.subr.mxu0 %v1533
        %1584 = vmatpush2.msra.mxu0 %v1532
        %1585 = vmatprep.subr.mxu0 %v1529
        %1586 = vmatpush2.msra.mxu0 %v1528
        %1587 = vmatprep.subr.mxu0 %v1525
        %1588 = vmatpush2.msra.mxu0 %v1524
        %1589 = vmatprep.subr.mxu0 %v1521
        %1590 = vmatpush2.msra.mxu0 %v1520
        %1591 = vmatprep.subr.mxu0 %v1517
        %1592 = vmatpush2.msra.mxu0 %v1516
        %1593 = vmatprep.subr.mxu0 %v1513
        %1594 = vmatpush2.msra.mxu0 %v1512
        %1595 = vmatprep.subr.mxu0 %v1509
        %1596 = vmatpush2.msra.mxu0 %v1508
        %1597 = vmatprep.subr.mxu0 %v1505
        %1598 = vmatpush2.msra.mxu0 %v1504
        %1599 = vmatprep.subr.mxu0 %v1501
        %1600 = vmatpush2.msra.mxu0 %v1500
        %1601 = vmatprep.subr.mxu0 %v1497
        %1602 = vmatpush2.msra.mxu0 %v1496
        %1603 = vmatprep.subr.mxu0 %v1493
        %1604 = vmatpush2.msra.mxu0 %v1492
        %1605 = vmatprep.subr.mxu0 %v1489
        %1606 = vmatpush2.msra.mxu0 %v1488
        %1607 = vmatprep.subr.mxu0 %v1485
        %1608 = vmatpush2.msra.mxu0 %v1484
        %1609 = vmatprep.subr.mxu0 %v1481
        %1610 = vmatpush2.msra.mxu0 %v1480
        %1611 = vmatprep.subr.mxu0 %v1477
        %1612 = vmatpush2.msra.mxu0 %v1476
        %1613 = vmatprep.mubr.f32.mxu0 %v1546
        %1614 = vmatmul.mubr.f32.gmra.mxu0 %v1545
        %v1615 = vpop.f32.mrf.mxu0
        %v1616 = vadd.f32 0.0, %v1615
        %v1617 = vpop.f32.mrf.mxu0
        %v1618 = vadd.f32 0.0, %v1617
        %1619 = vdwg.mxu0
        %1620 = vmatprep.subr.mxu0 %v1475
        %1621 = vmatpush1.msra.mxu0 %v1474
        %1622 = vmatprep.subr.mxu0 %v1471
        %1623 = vmatpush1.msra.mxu0 %v1470
        %1624 = vmatprep.subr.mxu0 %v1467
        %1625 = vmatpush1.msra.mxu0 %v1466
        %1626 = vmatprep.subr.mxu0 %v1463
        %1627 = vmatpush1.msra.mxu0 %v1462
        %1628 = vmatprep.subr.mxu0 %v1459
        %1629 = vmatpush1.msra.mxu0 %v1458
        %1630 = vmatprep.subr.mxu0 %v1455
        %1631 = vmatpush1.msra.mxu0 %v1454
        %1632 = vmatprep.subr.mxu0 %v1451
        %1633 = vmatpush1.msra.mxu0 %v1450
        %1634 = vmatprep.subr.mxu0 %v1447
        %1635 = vmatpush1.msra.mxu0 %v1446
        %1636 = vmatprep.subr.mxu0 %v1443
        %1637 = vmatpush1.msra.mxu0 %v1442
        %1638 = vmatprep.subr.mxu0 %v1439
        %1639 = vmatpush1.msra.mxu0 %v1438
        %1640 = vmatprep.subr.mxu0 %v1435
        %1641 = vmatpush1.msra.mxu0 %v1434
        %1642 = vmatprep.subr.mxu0 %v1431
        %1643 = vmatpush1.msra.mxu0 %v1430
        %1644 = vmatprep.subr.mxu0 %v1427
        %1645 = vmatpush1.msra.mxu0 %v1426
        %1646 = vmatprep.subr.mxu0 %v1423
        %1647 = vmatpush1.msra.mxu0 %v1422
        %1648 = vmatprep.subr.mxu0 %v1419
        %1649 = vmatpush1.msra.mxu0 %v1418
        %1650 = vmatprep.subr.mxu0 %v1415
        %1651 = vmatpush1.msra.mxu0 %v1414
        %1652 = vmatprep.subr.mxu0 %v1539
        %1653 = vmatpush2.msra.mxu0 %v1538
        %1654 = vmatprep.subr.mxu0 %v1535
        %1655 = vmatpush2.msra.mxu0 %v1534
        %1656 = vmatprep.subr.mxu0 %v1531
        %1657 = vmatpush2.msra.mxu0 %v1530
        %1658 = vmatprep.subr.mxu0 %v1527
        %1659 = vmatpush2.msra.mxu0 %v1526
        %1660 = vmatprep.subr.mxu0 %v1523
        %1661 = vmatpush2.msra.mxu0 %v1522
        %1662 = vmatprep.subr.mxu0 %v1519
        %1663 = vmatpush2.msra.mxu0 %v1518
        %1664 = vmatprep.subr.mxu0 %v1515
        %1665 = vmatpush2.msra.mxu0 %v1514
        %1666 = vmatprep.subr.mxu0 %v1511
        %1667 = vmatpush2.msra.mxu0 %v1510
        %1668 = vmatprep.subr.mxu0 %v1507
        %1669 = vmatpush2.msra.mxu0 %v1506
        %1670 = vmatprep.subr.mxu0 %v1503
        %1671 = vmatpush2.msra.mxu0 %v1502
        %1672 = vmatprep.subr.mxu0 %v1499
        %1673 = vmatpush2.msra.mxu0 %v1498
        %1674 = vmatprep.subr.mxu0 %v1495
        %1675 = vmatpush2.msra.mxu0 %v1494
        %1676 = vmatprep.subr.mxu0 %v1491
        %1677 = vmatpush2.msra.mxu0 %v1490
        %1678 = vmatprep.subr.mxu0 %v1487
        %1679 = vmatpush2.msra.mxu0 %v1486
        %1680 = vmatprep.subr.mxu0 %v1483
        %1681 = vmatpush2.msra.mxu0 %v1482
        %1682 = vmatprep.subr.mxu0 %v1479
        %1683 = vmatpush2.msra.mxu0 %v1478
        %1684 = vmatprep.mubr.f32.mxu0 %v1546
        %1685 = vmatmul.mubr.f32.gmra.mxu0 %v1545
        %v1686 = vpop.f32.mrf.mxu0
        %v1687 = vadd.f32 0.0, %v1686
        %v1688 = vpop.f32.mrf.mxu0
        %v1689 = vadd.f32 0.0, %v1688
        %1690 = vdwg.mxu0
        %v1695 = vcombine.low %v1616, %v1618
        %v1696 = vcombine.low %v1687, %v1689
        %v1698 = vunpack.c.l.s4 1983009808
        %v1699 = vunpack.c.0.s8 %v1698
        %v1700 = vlaneseq
        %v1701 = vshrl.u32 %v1700, 7
        %v1702 = vsub.s32 %v1699, %v1701
        %v1703 = vrot.slane %v1695, %v1702
        %v1705 = vunpack.c.l.s4 1983009808
        %v1706 = vunpack.c.0.s8 %v1705
        %v1707 = vlaneseq
        %v1708 = vshrl.u32 %v1707, 7
        %v1709 = vsub.s32 %v1706, %v1708
        %v1710 = vrot.slane %v1696, %v1709
        %v1711 = vcombine.low %v1703, %v1710
        %v1713 = vadd.f32 %v1347, %v1711
        %1714 = vst [vmem:[#allocation3] sm:$0xff] %v1713
        %p1715 = scmp.eq.s32.totalorder %s32, 3
        // Predicated region
        $region93: #{tpu_custom_call.1} parent=71 // pred_check
          %p1716 = pneg %p1715
        $region94: #{tpu_custom_call.1} parent=71 // pred_check_branch
          %1718 = sbr.rel (%p1716) target = $region96
        $region95: #{tpu_custom_call.1} parent=71 // pred_region
          %v1719 = vld [vmem:[#allocation3] sm:$0xff]
          %v1720 = vld [vmem:[%s8] sm:$0xf]
          %v1722 = vlaneseq
          %v1723 = vshrl.u32 %v1722, 7
          %v1724 = vsub.s32 0, %v1723
          %v1725 = vrot.slane %v1720, %v1724
          %v1726 = vlaneseq
          %v1727 = vshrl.u32 %v1726, 7
          %v1728 = vsub.s32 1, %v1727
          %v1729 = vrot.slane %v1720, %v1728
          %v1730 = vlaneseq
          %v1731 = vshrl.u32 %v1730, 7
          %v1732 = vsub.s32 2, %v1731
          %v1733 = vrot.slane %v1720, %v1732
          %v1734 = vlaneseq
          %v1735 = vshrl.u32 %v1734, 7
          %v1736 = vsub.s32 3, %v1735
          %v1737 = vrot.slane %v1720, %v1736
          %v1738 = vcombine.low %v1725, %v1729
          %v1739 = vcombine.low %v1733, %v1737
          %v1741 = vunpack.c.l.s4 1983009808
          %v1742 = vunpack.c.0.s8 %v1741
          %v1743 = vlaneseq
          %v1744 = vshrl.u32 %v1743, 7
          %v1745 = vsub.s32 %v1742, %v1744
          %v1746 = vrot.slane %v1738, %v1745
          %v1748 = vunpack.c.l.s4 1983009808
          %v1749 = vunpack.c.0.s8 %v1748
          %v1750 = vlaneseq
          %v1751 = vshrl.u32 %v1750, 7
          %v1752 = vsub.s32 %v1749, %v1751
          %v1753 = vrot.slane %v1739, %v1752
          %v1754 = vcombine.low %v1746, %v1753
          %v1756 = vadd.f32 %v1719, %v1754
          %v1757 = vmax.f32 %v1756, 0.0
          %v1758 = vld [vmem:[#allocation9] sm:$0xff]
          %v1759 = vld [vmem:[#allocation9 + $0x8] sm:$0xff]
          %v1760 = vld [vmem:[#allocation9 + $0x10] sm:$0xff]
          %v1761 = vld [vmem:[#allocation9 + $0x18] sm:$0xff]
          %v1762 = vld [vmem:[#allocation9 + $0x20] sm:$0xff]
          %v1763 = vld [vmem:[#allocation9 + $0x28] sm:$0xff]
          %v1764 = vld [vmem:[#allocation9 + $0x30] sm:$0xff]
          %v1765 = vld [vmem:[#allocation9 + $0x38] sm:$0xff]
          %v1766 = vld [vmem:[#allocation9 + $0x40] sm:$0xff]
          %v1767 = vld [vmem:[#allocation9 + $0x48] sm:$0xff]
          %v1768 = vld [vmem:[#allocation9 + $0x50] sm:$0xff]
          %v1769 = vld [vmem:[#allocation9 + $0x58] sm:$0xff]
          %v1770 = vld [vmem:[#allocation9 + $0x60] sm:$0xff]
          %v1771 = vld [vmem:[#allocation9 + $0x68] sm:$0xff]
          %v1772 = vld [vmem:[#allocation9 + $0x70] sm:$0xff]
          %v1773 = vld [vmem:[#allocation9 + $0x78] sm:$0xff]
          %v1774 = vld [vmem:[#allocation9 + $0x80] sm:$0xff]
          %v1775 = vld [vmem:[#allocation9 + $0x88] sm:$0xff]
          %v1776 = vld [vmem:[#allocation9 + $0x90] sm:$0xff]
          %v1777 = vld [vmem:[#allocation9 + $0x98] sm:$0xff]
          %v1778 = vld [vmem:[#allocation9 + $0xa0] sm:$0xff]
          %v1779 = vld [vmem:[#allocation9 + $0xa8] sm:$0xff]
          %v1780 = vld [vmem:[#allocation9 + $0xb0] sm:$0xff]
          %v1781 = vld [vmem:[#allocation9 + $0xb8] sm:$0xff]
          %v1782 = vld [vmem:[#allocation9 + $0xc0] sm:$0xff]
          %v1783 = vld [vmem:[#allocation9 + $0xc8] sm:$0xff]
          %v1784 = vld [vmem:[#allocation9 + $0xd0] sm:$0xff]
          %v1785 = vld [vmem:[#allocation9 + $0xd8] sm:$0xff]
          %v1786 = vld [vmem:[#allocation9 + $0xe0] sm:$0xff]
          %v1787 = vld [vmem:[#allocation9 + $0xe8] sm:$0xff]
          %v1788 = vld [vmem:[#allocation9 + $0xf0] sm:$0xff]
          %v1789 = vld [vmem:[#allocation9 + $0xf8] sm:$0xff]
          %v1790 = vld [vmem:[#allocation9 + $0x100] sm:$0xff]
          %v1791 = vld [vmem:[#allocation9 + $0x108] sm:$0xff]
          %v1792 = vld [vmem:[#allocation9 + $0x110] sm:$0xff]
          %v1793 = vld [vmem:[#allocation9 + $0x118] sm:$0xff]
          %v1794 = vld [vmem:[#allocation9 + $0x120] sm:$0xff]
          %v1795 = vld [vmem:[#allocation9 + $0x128] sm:$0xff]
          %v1796 = vld [vmem:[#allocation9 + $0x130] sm:$0xff]
          %v1797 = vld [vmem:[#allocation9 + $0x138] sm:$0xff]
          %v1798 = vld [vmem:[#allocation9 + $0x140] sm:$0xff]
          %v1799 = vld [vmem:[#allocation9 + $0x148] sm:$0xff]
          %v1800 = vld [vmem:[#allocation9 + $0x150] sm:$0xff]
          %v1801 = vld [vmem:[#allocation9 + $0x158] sm:$0xff]
          %v1802 = vld [vmem:[#allocation9 + $0x160] sm:$0xff]
          %v1803 = vld [vmem:[#allocation9 + $0x168] sm:$0xff]
          %v1804 = vld [vmem:[#allocation9 + $0x170] sm:$0xff]
          %v1805 = vld [vmem:[#allocation9 + $0x178] sm:$0xff]
          %v1806 = vld [vmem:[#allocation9 + $0x180] sm:$0xff]
          %v1807 = vld [vmem:[#allocation9 + $0x188] sm:$0xff]
          %v1808 = vld [vmem:[#allocation9 + $0x190] sm:$0xff]
          %v1809 = vld [vmem:[#allocation9 + $0x198] sm:$0xff]
          %v1810 = vld [vmem:[#allocation9 + $0x1a0] sm:$0xff]
          %v1811 = vld [vmem:[#allocation9 + $0x1a8] sm:$0xff]
          %v1812 = vld [vmem:[#allocation9 + $0x1b0] sm:$0xff]
          %v1813 = vld [vmem:[#allocation9 + $0x1b8] sm:$0xff]
          %v1814 = vld [vmem:[#allocation9 + $0x1c0] sm:$0xff]
          %v1815 = vld [vmem:[#allocation9 + $0x1c8] sm:$0xff]
          %v1816 = vld [vmem:[#allocation9 + $0x1d0] sm:$0xff]
          %v1817 = vld [vmem:[#allocation9 + $0x1d8] sm:$0xff]
          %v1818 = vld [vmem:[#allocation9 + $0x1e0] sm:$0xff]
          %v1819 = vld [vmem:[#allocation9 + $0x1e8] sm:$0xff]
          %v1820 = vld [vmem:[#allocation9 + $0x1f0] sm:$0xff]
          %v1821 = vld [vmem:[#allocation9 + $0x1f8] sm:$0xff]
          %v1822 = vunpack.c.l.bf16 %v1758
          %v1823 = vunpack.c.h.bf16 %v1758
          %v1824 = vunpack.c.l.bf16 %v1759
          %v1825 = vunpack.c.h.bf16 %v1759
          %v1826 = vunpack.c.l.bf16 %v1760
          %v1827 = vunpack.c.h.bf16 %v1760
          %v1828 = vunpack.c.l.bf16 %v1761
          %v1829 = vunpack.c.h.bf16 %v1761
          %v1830 = vunpack.c.l.bf16 %v1762
          %v1831 = vunpack.c.h.bf16 %v1762
          %v1832 = vunpack.c.l.bf16 %v1763
          %v1833 = vunpack.c.h.bf16 %v1763
          %v1834 = vunpack.c.l.bf16 %v1764
          %v1835 = vunpack.c.h.bf16 %v1764
          %v1836 = vunpack.c.l.bf16 %v1765
          %v1837 = vunpack.c.h.bf16 %v1765
          %v1838 = vunpack.c.l.bf16 %v1766
          %v1839 = vunpack.c.h.bf16 %v1766
          %v1840 = vunpack.c.l.bf16 %v1767
          %v1841 = vunpack.c.h.bf16 %v1767
          %v1842 = vunpack.c.l.bf16 %v1768
          %v1843 = vunpack.c.h.bf16 %v1768
          %v1844 = vunpack.c.l.bf16 %v1769
          %v1845 = vunpack.c.h.bf16 %v1769
          %v1846 = vunpack.c.l.bf16 %v1770
          %v1847 = vunpack.c.h.bf16 %v1770
          %v1848 = vunpack.c.l.bf16 %v1771
          %v1849 = vunpack.c.h.bf16 %v1771
          %v1850 = vunpack.c.l.bf16 %v1772
          %v1851 = vunpack.c.h.bf16 %v1772
          %v1852 = vunpack.c.l.bf16 %v1773
          %v1853 = vunpack.c.h.bf16 %v1773
          %v1854 = vunpack.c.l.bf16 %v1774
          %v1855 = vunpack.c.h.bf16 %v1774
          %v1856 = vunpack.c.l.bf16 %v1775
          %v1857 = vunpack.c.h.bf16 %v1775
          %v1858 = vunpack.c.l.bf16 %v1776
          %v1859 = vunpack.c.h.bf16 %v1776
          %v1860 = vunpack.c.l.bf16 %v1777
          %v1861 = vunpack.c.h.bf16 %v1777
          %v1862 = vunpack.c.l.bf16 %v1778
          %v1863 = vunpack.c.h.bf16 %v1778
          %v1864 = vunpack.c.l.bf16 %v1779
          %v1865 = vunpack.c.h.bf16 %v1779
          %v1866 = vunpack.c.l.bf16 %v1780
          %v1867 = vunpack.c.h.bf16 %v1780
          %v1868 = vunpack.c.l.bf16 %v1781
          %v1869 = vunpack.c.h.bf16 %v1781
          %v1870 = vunpack.c.l.bf16 %v1782
          %v1871 = vunpack.c.h.bf16 %v1782
          %v1872 = vunpack.c.l.bf16 %v1783
          %v1873 = vunpack.c.h.bf16 %v1783
          %v1874 = vunpack.c.l.bf16 %v1784
          %v1875 = vunpack.c.h.bf16 %v1784
          %v1876 = vunpack.c.l.bf16 %v1785
          %v1877 = vunpack.c.h.bf16 %v1785
          %v1878 = vunpack.c.l.bf16 %v1786
          %v1879 = vunpack.c.h.bf16 %v1786
          %v1880 = vunpack.c.l.bf16 %v1787
          %v1881 = vunpack.c.h.bf16 %v1787
          %v1882 = vunpack.c.l.bf16 %v1788
          %v1883 = vunpack.c.h.bf16 %v1788
          %v1884 = vunpack.c.l.bf16 %v1789
          %v1885 = vunpack.c.h.bf16 %v1789
          %v1886 = vunpack.c.l.bf16 %v1790
          %v1887 = vunpack.c.h.bf16 %v1790
          %v1888 = vunpack.c.l.bf16 %v1791
          %v1889 = vunpack.c.h.bf16 %v1791
          %v1890 = vunpack.c.l.bf16 %v1792
          %v1891 = vunpack.c.h.bf16 %v1792
          %v1892 = vunpack.c.l.bf16 %v1793
          %v1893 = vunpack.c.h.bf16 %v1793
          %v1894 = vunpack.c.l.bf16 %v1794
          %v1895 = vunpack.c.h.bf16 %v1794
          %v1896 = vunpack.c.l.bf16 %v1795
          %v1897 = vunpack.c.h.bf16 %v1795
          %v1898 = vunpack.c.l.bf16 %v1796
          %v1899 = vunpack.c.h.bf16 %v1796
          %v1900 = vunpack.c.l.bf16 %v1797
          %v1901 = vunpack.c.h.bf16 %v1797
          %v1902 = vunpack.c.l.bf16 %v1798
          %v1903 = vunpack.c.h.bf16 %v1798
          %v1904 = vunpack.c.l.bf16 %v1799
          %v1905 = vunpack.c.h.bf16 %v1799
          %v1906 = vunpack.c.l.bf16 %v1800
          %v1907 = vunpack.c.h.bf16 %v1800
          %v1908 = vunpack.c.l.bf16 %v1801
          %v1909 = vunpack.c.h.bf16 %v1801
          %v1910 = vunpack.c.l.bf16 %v1802
          %v1911 = vunpack.c.h.bf16 %v1802
          %v1912 = vunpack.c.l.bf16 %v1803
          %v1913 = vunpack.c.h.bf16 %v1803
          %v1914 = vunpack.c.l.bf16 %v1804
          %v1915 = vunpack.c.h.bf16 %v1804
          %v1916 = vunpack.c.l.bf16 %v1805
          %v1917 = vunpack.c.h.bf16 %v1805
          %v1918 = vunpack.c.l.bf16 %v1806
          %v1919 = vunpack.c.h.bf16 %v1806
          %v1920 = vunpack.c.l.bf16 %v1807
          %v1921 = vunpack.c.h.bf16 %v1807
          %v1922 = vunpack.c.l.bf16 %v1808
          %v1923 = vunpack.c.h.bf16 %v1808
          %v1924 = vunpack.c.l.bf16 %v1809
          %v1925 = vunpack.c.h.bf16 %v1809
          %v1926 = vunpack.c.l.bf16 %v1810
          %v1927 = vunpack.c.h.bf16 %v1810
          %v1928 = vunpack.c.l.bf16 %v1811
          %v1929 = vunpack.c.h.bf16 %v1811
          %v1930 = vunpack.c.l.bf16 %v1812
          %v1931 = vunpack.c.h.bf16 %v1812
          %v1932 = vunpack.c.l.bf16 %v1813
          %v1933 = vunpack.c.h.bf16 %v1813
          %v1934 = vunpack.c.l.bf16 %v1814
          %v1935 = vunpack.c.h.bf16 %v1814
          %v1936 = vunpack.c.l.bf16 %v1815
          %v1937 = vunpack.c.h.bf16 %v1815
          %v1938 = vunpack.c.l.bf16 %v1816
          %v1939 = vunpack.c.h.bf16 %v1816
          %v1940 = vunpack.c.l.bf16 %v1817
          %v1941 = vunpack.c.h.bf16 %v1817
          %v1942 = vunpack.c.l.bf16 %v1818
          %v1943 = vunpack.c.h.bf16 %v1818
          %v1944 = vunpack.c.l.bf16 %v1819
          %v1945 = vunpack.c.h.bf16 %v1819
          %v1946 = vunpack.c.l.bf16 %v1820
          %v1947 = vunpack.c.h.bf16 %v1820
          %v1948 = vunpack.c.l.bf16 %v1821
          %v1949 = vunpack.c.h.bf16 %v1821
          %v1950 = vld [vmem:[%s10] sm:$0x3]
          %v1952 = vlaneseq
          %v1953 = vshrl.u32 %v1952, 7
          %v1954 = vsub.s32 0, %v1953
          %v1955 = vrot.slane %v1950, %v1954
          %v1956 = vlaneseq
          %v1957 = vshrl.u32 %v1956, 7
          %v1958 = vsub.s32 1, %v1957
          %v1959 = vrot.slane %v1950, %v1958
          %v1963 = vcombine.high %v1757, %v1757
          %v1965 = vunpack.c.l.s4 1983009808
          %v1966 = vunpack.c.0.s8 %v1965
          %v1967 = vlaneseq
          %v1968 = vshrl.u32 %v1967, 7
          %v1969 = vsub.s32 %v1966, %v1968
          %v1970 = vrot.slane %v1757, %v1969
          %v1972 = vunpack.c.l.s4 1983009808
          %v1973 = vunpack.c.0.s8 %v1972
          %v1974 = vlaneseq
          %v1975 = vshrl.u32 %v1974, 7
          %v1976 = vsub.s32 %v1973, %v1975
          %v1977 = vrot.slane %v1963, %v1976
          %v1978 = vcombine.high %v1970, %v1970
          %v1979 = vcombine.high %v1977, %v1977
          %1984 = vmatprep.subr.mxu0 %v1853
          %1985 = vmatpush1.msra.mxu0 %v1852
          %1986 = vmatprep.subr.mxu0 %v1851
          %1987 = vmatpush1.msra.mxu0 %v1850
          %1988 = vmatprep.subr.mxu0 %v1849
          %1989 = vmatpush1.msra.mxu0 %v1848
          %1990 = vmatprep.subr.mxu0 %v1847
          %1991 = vmatpush1.msra.mxu0 %v1846
          %1992 = vmatprep.subr.mxu0 %v1845
          %1993 = vmatpush1.msra.mxu0 %v1844
          %1994 = vmatprep.subr.mxu0 %v1843
          %1995 = vmatpush1.msra.mxu0 %v1842
          %1996 = vmatprep.subr.mxu0 %v1841
          %1997 = vmatpush1.msra.mxu0 %v1840
          %1998 = vmatprep.subr.mxu0 %v1839
          %1999 = vmatpush1.msra.mxu0 %v1838
          %2000 = vmatprep.subr.mxu0 %v1837
          %2001 = vmatpush1.msra.mxu0 %v1836
          %2002 = vmatprep.subr.mxu0 %v1835
          %2003 = vmatpush1.msra.mxu0 %v1834
          %2004 = vmatprep.subr.mxu0 %v1833
          %2005 = vmatpush1.msra.mxu0 %v1832
          %2006 = vmatprep.subr.mxu0 %v1831
          %2007 = vmatpush1.msra.mxu0 %v1830
          %2008 = vmatprep.subr.mxu0 %v1829
          %2009 = vmatpush1.msra.mxu0 %v1828
          %2010 = vmatprep.subr.mxu0 %v1827
          %2011 = vmatpush1.msra.mxu0 %v1826
          %2012 = vmatprep.subr.mxu0 %v1825
          %2013 = vmatpush1.msra.mxu0 %v1824
          %2014 = vmatprep.subr.mxu0 %v1823
          %2015 = vmatpush1.msra.mxu0 %v1822
          %2016 = vmatprep.subr.mxu0 %v1885
          %2017 = vmatpush2.msra.mxu0 %v1884
          %2018 = vmatprep.subr.mxu0 %v1883
          %2019 = vmatpush2.msra.mxu0 %v1882
          %2020 = vmatprep.subr.mxu0 %v1881
          %2021 = vmatpush2.msra.mxu0 %v1880
          %2022 = vmatprep.subr.mxu0 %v1879
          %2023 = vmatpush2.msra.mxu0 %v1878
          %2024 = vmatprep.subr.mxu0 %v1877
          %2025 = vmatpush2.msra.mxu0 %v1876
          %2026 = vmatprep.subr.mxu0 %v1875
          %2027 = vmatpush2.msra.mxu0 %v1874
          %2028 = vmatprep.subr.mxu0 %v1873
          %2029 = vmatpush2.msra.mxu0 %v1872
          %2030 = vmatprep.subr.mxu0 %v1871
          %2031 = vmatpush2.msra.mxu0 %v1870
          %2032 = vmatprep.subr.mxu0 %v1869
          %2033 = vmatpush2.msra.mxu0 %v1868
          %2034 = vmatprep.subr.mxu0 %v1867
          %2035 = vmatpush2.msra.mxu0 %v1866
          %2036 = vmatprep.subr.mxu0 %v1865
          %2037 = vmatpush2.msra.mxu0 %v1864
          %2038 = vmatprep.subr.mxu0 %v1863
          %2039 = vmatpush2.msra.mxu0 %v1862
          %2040 = vmatprep.subr.mxu0 %v1861
          %2041 = vmatpush2.msra.mxu0 %v1860
          %2042 = vmatprep.subr.mxu0 %v1859
          %2043 = vmatpush2.msra.mxu0 %v1858
          %2044 = vmatprep.subr.mxu0 %v1857
          %2045 = vmatpush2.msra.mxu0 %v1856
          %2046 = vmatprep.subr.mxu0 %v1855
          %2047 = vmatpush2.msra.mxu0 %v1854
          %2048 = vmatprep.mubr.f32.mxu0 %v1978
          %2049 = vmatmul.mubr.f32.gmra.mxu0 %v1970
          %v2050 = vpop.f32.mrf.mxu0
          %v2051 = vadd.f32 %v1955, %v2050
          %v2052 = vpop.f32.mrf.mxu0
          %v2053 = vadd.f32 %v1959, %v2052
          %2054 = vdwg.mxu0
          %2055 = vmatprep.subr.mxu0 %v1917
          %2056 = vmatpush1.msra.mxu0 %v1916
          %2057 = vmatprep.subr.mxu0 %v1915
          %2058 = vmatpush1.msra.mxu0 %v1914
          %2059 = vmatprep.subr.mxu0 %v1913
          %2060 = vmatpush1.msra.mxu0 %v1912
          %2061 = vmatprep.subr.mxu0 %v1911
          %2062 = vmatpush1.msra.mxu0 %v1910
          %2063 = vmatprep.subr.mxu0 %v1909
          %2064 = vmatpush1.msra.mxu0 %v1908
          %2065 = vmatprep.subr.mxu0 %v1907
          %2066 = vmatpush1.msra.mxu0 %v1906
          %2067 = vmatprep.subr.mxu0 %v1905
          %2068 = vmatpush1.msra.mxu0 %v1904
          %2069 = vmatprep.subr.mxu0 %v1903
          %2070 = vmatpush1.msra.mxu0 %v1902
          %2071 = vmatprep.subr.mxu0 %v1901
          %2072 = vmatpush1.msra.mxu0 %v1900
          %2073 = vmatprep.subr.mxu0 %v1899
          %2074 = vmatpush1.msra.mxu0 %v1898
          %2075 = vmatprep.subr.mxu0 %v1897
          %2076 = vmatpush1.msra.mxu0 %v1896
          %2077 = vmatprep.subr.mxu0 %v1895
          %2078 = vmatpush1.msra.mxu0 %v1894
          %2079 = vmatprep.subr.mxu0 %v1893
          %2080 = vmatpush1.msra.mxu0 %v1892
          %2081 = vmatprep.subr.mxu0 %v1891
          %2082 = vmatpush1.msra.mxu0 %v1890
          %2083 = vmatprep.subr.mxu0 %v1889
          %2084 = vmatpush1.msra.mxu0 %v1888
          %2085 = vmatprep.subr.mxu0 %v1887
          %2086 = vmatpush1.msra.mxu0 %v1886
          %2087 = vmatprep.subr.mxu0 %v1949
          %2088 = vmatpush2.msra.mxu0 %v1948
          %2089 = vmatprep.subr.mxu0 %v1947
          %2090 = vmatpush2.msra.mxu0 %v1946
          %2091 = vmatprep.subr.mxu0 %v1945
          %2092 = vmatpush2.msra.mxu0 %v1944
          %2093 = vmatprep.subr.mxu0 %v1943
          %2094 = vmatpush2.msra.mxu0 %v1942
          %2095 = vmatprep.subr.mxu0 %v1941
          %2096 = vmatpush2.msra.mxu0 %v1940
          %2097 = vmatprep.subr.mxu0 %v1939
          %2098 = vmatpush2.msra.mxu0 %v1938
          %2099 = vmatprep.subr.mxu0 %v1937
          %2100 = vmatpush2.msra.mxu0 %v1936
          %2101 = vmatprep.subr.mxu0 %v1935
          %2102 = vmatpush2.msra.mxu0 %v1934
          %2103 = vmatprep.subr.mxu0 %v1933
          %2104 = vmatpush2.msra.mxu0 %v1932
          %2105 = vmatprep.subr.mxu0 %v1931
          %2106 = vmatpush2.msra.mxu0 %v1930
          %2107 = vmatprep.subr.mxu0 %v1929
          %2108 = vmatpush2.msra.mxu0 %v1928
          %2109 = vmatprep.subr.mxu0 %v1927
          %2110 = vmatpush2.msra.mxu0 %v1926
          %2111 = vmatprep.subr.mxu0 %v1925
          %2112 = vmatpush2.msra.mxu0 %v1924
          %2113 = vmatprep.subr.mxu0 %v1923
          %2114 = vmatpush2.msra.mxu0 %v1922
          %2115 = vmatprep.subr.mxu0 %v1921
          %2116 = vmatpush2.msra.mxu0 %v1920
          %2117 = vmatprep.subr.mxu0 %v1919
          %2118 = vmatpush2.msra.mxu0 %v1918
          %2119 = vmatprep.mubr.f32.mxu0 %v1979
          %2120 = vmatmul.mubr.f32.gmra.mxu0 %v1977
          %v2121 = vpop.f32.mrf.mxu0
          %v2122 = vadd.f32 %v2051, %v2121
          %v2123 = vpop.f32.mrf.mxu0
          %v2124 = vadd.f32 %v2053, %v2123
          %2125 = vdwg.mxu0
          %v2126 = vmax.f32 %v2122, 0.0
          %v2127 = vmax.f32 %v2124, 0.0
          %v2128 = vld [vmem:[#allocation10] sm:$0xff]
          %v2129 = vld [vmem:[#allocation10 + $0x8] sm:$0xff]
          %v2130 = vld [vmem:[#allocation10 + $0x10] sm:$0xff]
          %v2131 = vld [vmem:[#allocation10 + $0x18] sm:$0xff]
          %v2132 = vld [vmem:[#allocation10 + $0x20] sm:$0xff]
          %v2133 = vld [vmem:[#allocation10 + $0x28] sm:$0xff]
          %v2134 = vld [vmem:[#allocation10 + $0x30] sm:$0xff]
          %v2135 = vld [vmem:[#allocation10 + $0x38] sm:$0xff]
          %v2136 = vld [vmem:[#allocation10 + $0x40] sm:$0xff]
          %v2137 = vld [vmem:[#allocation10 + $0x48] sm:$0xff]
          %v2138 = vld [vmem:[#allocation10 + $0x50] sm:$0xff]
          %v2139 = vld [vmem:[#allocation10 + $0x58] sm:$0xff]
          %v2140 = vld [vmem:[#allocation10 + $0x60] sm:$0xff]
          %v2141 = vld [vmem:[#allocation10 + $0x68] sm:$0xff]
          %v2142 = vld [vmem:[#allocation10 + $0x70] sm:$0xff]
          %v2143 = vld [vmem:[#allocation10 + $0x78] sm:$0xff]
          %v2144 = vld [vmem:[#allocation10 + $0x80] sm:$0xff]
          %v2145 = vld [vmem:[#allocation10 + $0x88] sm:$0xff]
          %v2146 = vld [vmem:[#allocation10 + $0x90] sm:$0xff]
          %v2147 = vld [vmem:[#allocation10 + $0x98] sm:$0xff]
          %v2148 = vld [vmem:[#allocation10 + $0xa0] sm:$0xff]
          %v2149 = vld [vmem:[#allocation10 + $0xa8] sm:$0xff]
          %v2150 = vld [vmem:[#allocation10 + $0xb0] sm:$0xff]
          %v2151 = vld [vmem:[#allocation10 + $0xb8] sm:$0xff]
          %v2152 = vld [vmem:[#allocation10 + $0xc0] sm:$0xff]
          %v2153 = vld [vmem:[#allocation10 + $0xc8] sm:$0xff]
          %v2154 = vld [vmem:[#allocation10 + $0xd0] sm:$0xff]
          %v2155 = vld [vmem:[#allocation10 + $0xd8] sm:$0xff]
          %v2156 = vld [vmem:[#allocation10 + $0xe0] sm:$0xff]
          %v2157 = vld [vmem:[#allocation10 + $0xe8] sm:$0xff]
          %v2158 = vld [vmem:[#allocation10 + $0xf0] sm:$0xff]
          %v2159 = vld [vmem:[#allocation10 + $0xf8] sm:$0xff]
          %v2160 = vld [vmem:[%s12] sm:$0x1]
          %v2162 = vlaneseq
          %v2163 = vshrl.u32 %v2162, 7
          %v2164 = vsub.s32 0, %v2163
          %v2165 = vrot.slane %v2160, %v2164
          %2167 = vmatprep.subr.mxu0 0.0
          %2168 = vmatpush1.msra.mxu0 %v2143
          %2169 = vmatprep.subr.mxu0 0.0
          %2170 = vmatpush1.msra.mxu0 %v2142
          %2171 = vmatprep.subr.mxu0 0.0
          %2172 = vmatpush1.msra.mxu0 %v2141
          %2173 = vmatprep.subr.mxu0 0.0
          %2174 = vmatpush1.msra.mxu0 %v2140
          %2175 = vmatprep.subr.mxu0 0.0
          %2176 = vmatpush1.msra.mxu0 %v2139
          %2177 = vmatprep.subr.mxu0 0.0
          %2178 = vmatpush1.msra.mxu0 %v2138
          %2179 = vmatprep.subr.mxu0 0.0
          %2180 = vmatpush1.msra.mxu0 %v2137
          %2181 = vmatprep.subr.mxu0 0.0
          %2182 = vmatpush1.msra.mxu0 %v2136
          %2183 = vmatprep.subr.mxu0 0.0
          %2184 = vmatpush1.msra.mxu0 %v2135
          %2185 = vmatprep.subr.mxu0 0.0
          %2186 = vmatpush1.msra.mxu0 %v2134
          %2187 = vmatprep.subr.mxu0 0.0
          %2188 = vmatpush1.msra.mxu0 %v2133
          %2189 = vmatprep.subr.mxu0 0.0
          %2190 = vmatpush1.msra.mxu0 %v2132
          %2191 = vmatprep.subr.mxu0 0.0
          %2192 = vmatpush1.msra.mxu0 %v2131
          %2193 = vmatprep.subr.mxu0 0.0
          %2194 = vmatpush1.msra.mxu0 %v2130
          %2195 = vmatprep.subr.mxu0 0.0
          %2196 = vmatpush1.msra.mxu0 %v2129
          %2197 = vmatprep.subr.mxu0 0.0
          %2198 = vmatpush1.msra.mxu0 %v2128
          %2199 = vmatprep.subr.mxu0 0.0
          %2200 = vmatpush2.msra.mxu0 %v2159
          %2201 = vmatprep.subr.mxu0 0.0
          %2202 = vmatpush2.msra.mxu0 %v2158
          %2203 = vmatprep.subr.mxu0 0.0
          %2204 = vmatpush2.msra.mxu0 %v2157
          %2205 = vmatprep.subr.mxu0 0.0
          %2206 = vmatpush2.msra.mxu0 %v2156
          %2207 = vmatprep.subr.mxu0 0.0
          %2208 = vmatpush2.msra.mxu0 %v2155
          %2209 = vmatprep.subr.mxu0 0.0
          %2210 = vmatpush2.msra.mxu0 %v2154
          %2211 = vmatprep.subr.mxu0 0.0
          %2212 = vmatpush2.msra.mxu0 %v2153
          %2213 = vmatprep.subr.mxu0 0.0
          %2214 = vmatpush2.msra.mxu0 %v2152
          %2215 = vmatprep.subr.mxu0 0.0
          %2216 = vmatpush2.msra.mxu0 %v2151
          %2217 = vmatprep.subr.mxu0 0.0
          %2218 = vmatpush2.msra.mxu0 %v2150
          %2219 = vmatprep.subr.mxu0 0.0
          %2220 = vmatpush2.msra.mxu0 %v2149
          %2221 = vmatprep.subr.mxu0 0.0
          %2222 = vmatpush2.msra.mxu0 %v2148
          %2223 = vmatprep.subr.mxu0 0.0
          %2224 = vmatpush2.msra.mxu0 %v2147
          %2225 = vmatprep.subr.mxu0 0.0
          %2226 = vmatpush2.msra.mxu0 %v2146
          %2227 = vmatprep.subr.mxu0 0.0
          %2228 = vmatpush2.msra.mxu0 %v2145
          %2229 = vmatprep.subr.mxu0 0.0
          %2230 = vmatpush2.msra.mxu0 %v2144
          %2231 = vmatprep.mubr.f32.mxu0 %v2127
          %2232 = vmatmul.mubr.f32.gmra.mxu0 %v2126
          %v2233 = vpop.f32.mrf.mxu0
          %v2234 = vadd.f32 %v2165, %v2233
          %v2235 = vpop.f32.mrf.mxu0
          %2236 = vdwg.mxu0
          %2237 = vst [vmem:[#allocation12] sm:$0x3] %v2234
        $region96: #{tpu_custom_call.1} parent=71 // pred_fallthru
          _
        // Predicated region
        $region97: #{tpu_custom_call.1} parent=71 // pred_check
          %p2238 = pneg %p333
        $region98: #{tpu_custom_call.1} parent=71 // pred_check_branch
          %2240 = sbr.rel (%p2238) target = $region100
        $region99: #{tpu_custom_call.1} parent=71 // pred_region
          %s2242 = ssub.s32 32, 32
          %2243 = vsyncadd [#allocation6], %s2242
          %s2245 = sshll.u32 [#allocation12], 4
          %s2246 = int_to_ptr.vmem [resolvable:$true] %s2245
          %2248 = dma.vmem_to_hbm [thread:$0]  %s2246, 32, %s13, [#allocation6]
        $region100: #{tpu_custom_call.1} parent=71 // pred_fallthru
          _
        // Predicated region
        $region101: #{tpu_custom_call.1} parent=71 // pred_check
          %p2249 = pneg %p333
        $region102: #{tpu_custom_call.1} parent=71 // pred_check_branch
          %2251 = sbr.rel (%p2249) target = $region104
        $region103: #{tpu_custom_call.1} parent=71 // pred_region
          %2252 = dma.done [#allocation6], 32
        $region104: #{tpu_custom_call.1} parent=71 // pred_fallthru
          _
      $region72: #{tpu_custom_call.1} parent=5 // pred_fallthru
        _
      %p2253 = scmp.le.s32.totalorder 2, %s27
      // Predicated region
      $region105: #{tpu_custom_call.1} parent=5 // pred_check
        %p2254 = pneg %p2253
      $region106: #{tpu_custom_call.1} parent=5 // pred_check_branch
        %2256 = sbr.rel (%p2254) target = $region108
      $region107: #{tpu_custom_call.1} parent=5 // pred_region
        %s2257 = ssub.s32 %s27, 2
      $region108: #{tpu_custom_call.1} parent=5 // pred_fallthru
        _
    $region6: #{tpu_custom_call.1} parent=1 // loop_footer
      %s31 = sadd.s32 1, %s27
    $region7: #{tpu_custom_call.1} parent=1 // loop_footer_branch
      %26 = sbr.rel target = $region3
    $region8: #{tpu_custom_call.1} parent=1 // loop_exit
      _
    %2258 = vsyncpa [#allocation5], 1
    %s2259 = scalar_lea.sflag [#allocation5], 1
    %2260 = vsyncpa %s2259, 1
    %2261 = vsyncpa [#allocation8], 1
    %s2262 = scalar_lea.sflag [#allocation8], 1
    %2263 = vsyncpa %s2262, 1
    %2264 = vsyncpa [#allocation11], 1
    %2265 = vsyncpa [#allocation6], 1
    %s2266 = scalar_lea.sflag [#allocation6], 1
    %2267 = vsyncpa %s2266, 1

</llo_original>
